<compile_context>
chip_gen: v5e
topology: v5e:2x2
jax: 0.10.0
libtpu: 0.0.40
codegen_flags: <defaults>
</compile_context>

<pallas_src>
import jax
import jax.numpy as jnp
from jax.experimental import pallas as pl
from jax.experimental.pallas import tpu as pltpu  # noqa: F401  (TPU backend assumed)

# ----------------------------- mini-BERT config ------------------------------
VOCAB_SIZE = 64
TYPE_VOCAB_SIZE = 2
MAX_POSITIONS = 32
HIDDEN = 32
N_HEADS = 2
HEAD_DIM = HIDDEN // N_HEADS
INTERMEDIATE = 64
N_LAYERS = 2
LABEL_SIZE = 5
LABEL_PAD = 128          # lane-dense output slab; sliced back to LABEL_SIZE in wrapper
LN_EPS = 1e-12

# packed row-vector slab layout (all rows zero-padded to VEC_W lanes)
VEC_W = 128
ROWS_PER_LAYER = 8       # bqkv, bo, ln1_g, ln1_b, b1, b2, ln2_g, ln2_b
VEC_ROWS = 2 + ROWS_PER_LAYER * N_LAYERS + 1   # emb_ln_g, emb_ln_b, layers..., cls_b


# ------------------------------ fused Pallas kernel ----------------------------
def _bert_forward_kernel(emb_ref, mask_ref, vecs_ref,
                         wqkv_ref, wo_ref, w1_ref, w2_ref, clsw_ref,
                         out_ref):
    """Whole BERT forward on one resident activation.

    emb_ref  : (M, HIDDEN)            summed word+pos+type embeddings
    mask_ref : (B, S)                 additive attention mask
    vecs_ref : (VEC_ROWS, VEC_W)      packed biases / LayerNorm params / cls bias
    wqkv_ref : (N_LAYERS, H, 3H)      fused QKV weights (Q pre-scaled by 1/sqrt(hd))
    wo_ref   : (N_LAYERS, H, H)       attention output projection
    w1_ref   : (N_LAYERS, H, I)       FFN in
    w2_ref   : (N_LAYERS, I, H)       FFN out
    clsw_ref : (H, LABEL_PAD)         classifier weights, zero-padded to 128 lanes
    out_ref  : (M, LABEL_PAD)
    """
    B, S = mask_ref.shape
    M = B * S

    def vrow(i, width):                 # static row / lane slice of the packed slab
        return vecs_ref[i:i + 1, :width]            # (1, width)

    def layernorm(x, g, b):
        mean = jnp.mean(x, axis=-1, keepdims=True)
        xc = x - mean
        var = jnp.mean(xc * xc, axis=-1, keepdims=True)
        inv = jax.lax.rsqrt(var + LN_EPS)
        return xc * inv * g + b

    # Embedding LayerNorm — no residual path (no wasted zeros add / HBM traffic).
    h = layernorm(emb_ref[...], vrow(0, HIDDEN), vrow(1, HIDDEN))   # (M, HIDDEN) f32

    # Additive attention mask broadcast over query rows: (B, 1, S).
    mask = mask_ref[...][:, None, :]

    for li in range(N_LAYERS):                                      # static unroll
        base = 2 + li * ROWS_PER_LAYER
        wqkv = wqkv_ref[li]                                         # (H, 3H)
        wo = wo_ref[li]                                             # (H, H)
        w1 = w1_ref[li]                                             # (H, I)
        w2 = w2_ref[li]                                             # (I, H)

        # Fused Q/K/V projection: one MXU pass, N = 3*HIDDEN output lanes.
        qkv = jnp.dot(h, wqkv, preferred_element_type=jnp.float32) + vrow(base + 0, 3 * HIDDEN)
        q = qkv[:, 0 * HIDDEN:1 * HIDDEN]   # Q already pre-scaled by 1/sqrt(head_dim)
        k = qkv[:, 1 * HIDDEN:2 * HIDDEN]
        v = qkv[:, 2 * HIDDEN:3 * HIDDEN]

        # All batches at once per head (batched dot_general, no k.T); static head loop.
        ctx_heads = []
        for hh in range(N_HEADS):
            c0, c1 = hh * HEAD_DIM, (hh + 1) * HEAD_DIM
            qh = q[:, c0:c1].reshape(B, S, HEAD_DIM)
            kh = k[:, c0:c1].reshape(B, S, HEAD_DIM)
            vh = v[:, c0:c1].reshape(B, S, HEAD_DIM)
            # scores: contract last dims, batch over B  ('bqd,bkd->bqk')
            s = jax.lax.dot_general(qh, kh, (((2,), (2,)), ((0,), (0,))),
                                    preferred_element_type=jnp.float32)      # (B, S, S)
            s = s + mask
            s = s - jnp.max(s, axis=-1, keepdims=True)
            p = jnp.exp(s)
            p = p * pl.reciprocal(jnp.sum(p, axis=-1, keepdims=True), approx=True)
            # context: 'bqk,bkd->bqd'
            ctx = jax.lax.dot_general(p, vh, (((2,), (1,)), ((0,), (0,))),
                                      preferred_element_type=jnp.float32)    # (B, S, HD)
            ctx_heads.append(ctx.reshape(M, HEAD_DIM))
        ctx = jnp.concatenate(ctx_heads, axis=-1)                             # (M, HIDDEN)

        attn_out = jnp.dot(ctx, wo, preferred_element_type=jnp.float32) + vrow(base + 1, HIDDEN)
        h = layernorm(attn_out + h, vrow(base + 2, HIDDEN), vrow(base + 3, HIDDEN))

        # FFN.  TODO(synk): HF/PyTorch BERT default is exact erf GELU; tanh approximation
        #                   used here for guaranteed Mosaic lowering (EUP tanh).
        ffn = jnp.dot(h, w1, preferred_element_type=jnp.float32) + vrow(base + 4, INTERMEDIATE)
        ffn = jax.nn.gelu(ffn, approximate=True)
        ffn = jnp.dot(ffn, w2, preferred_element_type=jnp.float32) + vrow(base + 5, HIDDEN)
        h = layernorm(ffn + h, vrow(base + 6, HIDDEN), vrow(base + 7, HIDDEN))

    # Dropout is identity at inference.  Classifier padded to 128 lanes so the single
    # HBM store of this kernel is lane-dense (unmasked vst).
    logits = (jnp.dot(h, clsw_ref[...], preferred_element_type=jnp.float32)
              + vrow(VEC_ROWS - 1, LABEL_PAD))
    out_ref[...] = logits.astype(out_ref.dtype)


# ------------------------------ parameter setup --------------------------------
def init_params(key):
    def dense(k, fan_in, fan_out):
        kw, _ = jax.random.split(k)
        return {
            "w": 0.02 * jax.random.normal(kw, (fan_in, fan_out), jnp.float32),
            "b": jnp.zeros((fan_out,), jnp.float32),
        }

    keys = jax.random.split(key, 8 + N_LAYERS)
    params = {
        "word_emb": 0.02 * jax.random.normal(keys[0], (VOCAB_SIZE, HIDDEN), jnp.float32),
        "pos_emb": 0.02 * jax.random.normal(keys[1], (MAX_POSITIONS, HIDDEN), jnp.float32),
        "type_emb": 0.02 * jax.random.normal(keys[2], (TYPE_VOCAB_SIZE, HIDDEN), jnp.float32),
        "emb_ln_g": jnp.ones((HIDDEN,), jnp.float32),
        "emb_ln_b": jnp.zeros((HIDDEN,), jnp.float32),
        "classifier": dense(keys[3], HIDDEN, LABEL_SIZE),
        "layers": [],
    }
    for li in range(N_LAYERS):
        lk = jax.random.split(keys[8 + li], 6)
        params["layers"].append({
            "q": dense(lk[0], HIDDEN, HIDDEN),
            "k": dense(lk[1], HIDDEN, HIDDEN),
            "v": dense(lk[2], HIDDEN, HIDDEN),
            "attn_out": dense(lk[3], HIDDEN, HIDDEN),
            "attn_ln_g": jnp.ones((HIDDEN,), jnp.float32),
            "attn_ln_b": jnp.zeros((HIDDEN,), jnp.float32),
            "ffn_in": dense(lk[4], HIDDEN, INTERMEDIATE),
            "ffn_out": dense(lk[5], INTERMEDIATE, HIDDEN),
            "ffn_ln_g": jnp.ones((HIDDEN,), jnp.float32),
            "ffn_ln_b": jnp.zeros((HIDDEN,), jnp.float32),
        })
    return params


# ------------------------------ forward pass -----------------------------------
def bert_softmax_forward(params, input_ids, token_type_ids, attention_mask):
    """Returns logits of shape (B, S, LABEL_SIZE)."""
    B, S = input_ids.shape
    M = B * S
    scale = 1.0 / (HEAD_DIM ** 0.5)

    # --- embeddings: data-dependent gathers stay in XLA (glue) ---
    pos_ids = jnp.arange(S)
    emb = (jnp.take(params["word_emb"], input_ids, axis=0)
           + jnp.take(params["pos_emb"], pos_ids, axis=0)[None, :, :]
           + jnp.take(params["type_emb"], token_type_ids, axis=0)).reshape(M, HIDDEN)

    # additive attention mask, (B, S) float — NOT broadcast per head.
    add_mask = (1.0 - attention_mask.astype(jnp.float32)) * -10000.0

    # --- pack / pre-fold weights for the fused kernel (host-side, one-time cost) ---
    def pad_row(v):
        return jnp.zeros((VEC_W,), jnp.float32).at[:v.shape[0]].set(v)

    vec_rows = [pad_row(params["emb_ln_g"]), pad_row(params["emb_ln_b"])]
    wqkv_list, wo_list, w1_list, w2_list = [], [], [], []
    for lp in params["layers"]:
        # fused QKV weights with 1/sqrt(head_dim) folded into the Q slice (free).
        wqkv_list.append(jnp.concatenate([lp["q"]["w"] * scale, lp["k"]["w"], lp["v"]["w"]], axis=1))
        bqkv = jnp.concatenate([lp["q"]["b"] * scale, lp["k"]["b"], lp["v"]["b"]])
        wo_list.append(lp["attn_out"]["w"])
        w1_list.append(lp["ffn_in"]["w"])
        w2_list.append(lp["ffn_out"]["w"])
        vec_rows += [pad_row(bqkv), pad_row(lp["attn_out"]["b"]),
                     pad_row(lp["attn_ln_g"]), pad_row(lp["attn_ln_b"]),
                     pad_row(lp["ffn_in"]["b"]), pad_row(lp["ffn_out"]["b"]),
                     pad_row(lp["ffn_ln_g"]), pad_row(lp["ffn_ln_b"])]
    # classifier zero-padded to a lane-dense 128-wide output slab.
    cls_w = jnp.zeros((HIDDEN, LABEL_PAD), jnp.float32).at[:, :LABEL_SIZE].set(params["classifier"]["w"])
    vec_rows.append(pad_row(params["classifier"]["b"]))

    vecs = jnp.stack(vec_rows)                    # (VEC_ROWS, 128)
    wqkv_all = jnp.stack(wqkv_list)               # (N_LAYERS, H, 3H)
    wo_all = jnp.stack(wo_list)                   # (N_LAYERS, H, H)
    w1_all = jnp.stack(w1_list)                   # (N_LAYERS, H, I)
    w2_all = jnp.stack(w2_list)                   # (N_LAYERS, I, H)

    # --- one fused pallas_call for the whole forward (grid-less, whole-array blocks) ---
    logits_pad = pl.pallas_call(
        _bert_forward_kernel,
        out_shape=jax.ShapeDtypeStruct((M, LABEL_PAD), jnp.float32),
    )(emb, add_mask, vecs, wqkv_all, wo_all, w1_all, w2_all, cls_w)

    return logits_pad[:, :LABEL_SIZE].reshape(B, S, LABEL_SIZE)


# ----------------------------------- main ---------------------------------------
if __name__ == "__main__":
    key = jax.random.PRNGKey(0)
    pkey, ikey = jax.random.split(key)
    params = init_params(pkey)

    B, S = 2, 8
    input_ids = jax.random.randint(ikey, (B, S), 0, VOCAB_SIZE, dtype=jnp.int32)
    token_type_ids = jnp.zeros((B, S), jnp.int32).at[:, S // 2:].set(1)
    attention_mask = jnp.ones((B, S), jnp.int32).at[1, 6:].set(0)  # pad last tokens of batch 1

    logits = bert_softmax_forward(params, input_ids, token_type_ids, attention_mask)
    logits = jax.block_until_ready(logits)

    assert logits.shape == (B, S, LABEL_SIZE), logits.shape
    assert logits.dtype == jnp.float32
    assert bool(jnp.all(jnp.isfinite(logits)))
    print("KERNEL_OK")
</pallas_src>

<mosaic_0001>
module attributes {stable_mosaic.version = 11 : i64} {
  func.func @_bert_forward_kernel(%arg0: memref<16x32xf32, #tpu.memory_space<vmem>>, %arg1: memref<2x8xf32, #tpu.memory_space<vmem>>, %arg2: memref<19x128xf32, #tpu.memory_space<vmem>>, %arg3: memref<2x32x96xf32, #tpu.memory_space<vmem>>, %arg4: memref<2x32x32xf32, #tpu.memory_space<vmem>>, %arg5: memref<2x32x64xf32, #tpu.memory_space<vmem>>, %arg6: memref<2x64x32xf32, #tpu.memory_space<vmem>>, %arg7: memref<32x128xf32, #tpu.memory_space<vmem>>, %arg8: memref<16x128xf32, #tpu.memory_space<vmem>>) attributes {dimension_semantics = [], scalar_prefetch = 0 : i64, scratch_operands = 0 : i64, tpu.core_type = #tpu.core_type<tc>} {
    %c0 = arith.constant 0 : index
    %c0_0 = arith.constant 0 : index
    %0 = vector.load %arg0[%c0, %c0_0] : memref<16x32xf32, #tpu.memory_space<vmem>>, vector<16x32xf32>
    %c0_1 = arith.constant 0 : index
    %c0_2 = arith.constant 0 : index
    %1 = vector.load %arg2[%c0_1, %c0_2] : memref<19x128xf32, #tpu.memory_space<vmem>>, vector<1x32xf32>
    %c1 = arith.constant 1 : index
    %c0_3 = arith.constant 0 : index
    %2 = vector.load %arg2[%c1, %c0_3] : memref<19x128xf32, #tpu.memory_space<vmem>>, vector<1x32xf32>
    %cst = arith.constant dense<0.000000e+00> : vector<16xf32>
    %3 = vector.multi_reduction <add>, %0, %cst [1] : vector<16x32xf32> to vector<16xf32>
    %4 = vector.shape_cast %3 : vector<16xf32> to vector<16x1xf32>
    %cst_4 = arith.constant 3.200000e+01 : f32
    %5 = vector.broadcast %cst_4 : f32 to vector<16x1xf32>
    %6 = arith.divf %4, %5 : vector<16x1xf32>
    %7 = vector.broadcast %6 : vector<16x1xf32> to vector<16x32xf32>
    %8 = arith.subf %0, %7 : vector<16x32xf32>
    %9 = arith.mulf %8, %8 : vector<16x32xf32>
    %cst_5 = arith.constant dense<0.000000e+00> : vector<16xf32>
    %10 = vector.multi_reduction <add>, %9, %cst_5 [1] : vector<16x32xf32> to vector<16xf32>
    %11 = vector.shape_cast %10 : vector<16xf32> to vector<16x1xf32>
    %cst_6 = arith.constant 3.200000e+01 : f32
    %12 = vector.broadcast %cst_6 : f32 to vector<16x1xf32>
    %13 = arith.divf %11, %12 : vector<16x1xf32>
    %cst_7 = arith.constant 9.99999996E-13 : f32
    %14 = vector.broadcast %cst_7 : f32 to vector<16x1xf32>
    %15 = arith.addf %13, %14 : vector<16x1xf32>
    %16 = math.rsqrt %15 : vector<16x1xf32>
    %17 = vector.broadcast %16 : vector<16x1xf32> to vector<16x32xf32>
    %18 = arith.mulf %8, %17 : vector<16x32xf32>
    %19 = vector.broadcast %1 : vector<1x32xf32> to vector<16x32xf32>
    %20 = arith.mulf %18, %19 : vector<16x32xf32>
    %21 = vector.broadcast %2 : vector<1x32xf32> to vector<16x32xf32>
    %22 = arith.addf %20, %21 : vector<16x32xf32>
    %c0_8 = arith.constant 0 : index
    %c0_9 = arith.constant 0 : index
    %23 = vector.load %arg1[%c0_8, %c0_9] : memref<2x8xf32, #tpu.memory_space<vmem>>, vector<2x8xf32>
    %24 = vector.shape_cast %23 : vector<2x8xf32> to vector<2x1x8xf32>
    %c0_10 = arith.constant 0 : index
    %c0_11 = arith.constant 0 : index
    %c0_12 = arith.constant 0 : index
    %25 = vector.load %arg3[%c0_10, %c0_11, %c0_12] : memref<2x32x96xf32, #tpu.memory_space<vmem>>, vector<1x32x96xf32>
    %26 = vector.shape_cast %25 : vector<1x32x96xf32> to vector<32x96xf32>
    %c0_13 = arith.constant 0 : index
    %c0_14 = arith.constant 0 : index
    %c0_15 = arith.constant 0 : index
    %27 = vector.load %arg4[%c0_13, %c0_14, %c0_15] : memref<2x32x32xf32, #tpu.memory_space<vmem>>, vector<1x32x32xf32>
    %28 = vector.shape_cast %27 : vector<1x32x32xf32> to vector<32x32xf32>
    %c0_16 = arith.constant 0 : index
    %c0_17 = arith.constant 0 : index
    %c0_18 = arith.constant 0 : index
    %29 = vector.load %arg5[%c0_16, %c0_17, %c0_18] : memref<2x32x64xf32, #tpu.memory_space<vmem>>, vector<1x32x64xf32>
    %30 = vector.shape_cast %29 : vector<1x32x64xf32> to vector<32x64xf32>
    %c0_19 = arith.constant 0 : index
    %c0_20 = arith.constant 0 : index
    %c0_21 = arith.constant 0 : index
    %31 = vector.load %arg6[%c0_19, %c0_20, %c0_21] : memref<2x64x32xf32, #tpu.memory_space<vmem>>, vector<1x64x32xf32>
    %32 = vector.shape_cast %31 : vector<1x64x32xf32> to vector<64x32xf32>
    %cst_22 = arith.constant dense<0.000000e+00> : vector<16x96xf32>
    %33 = tpu.matmul %22, %26, %cst_22 {dimension_numbers = #tpu.dot_dimension_numbers<[1], [0], [0], [1], [0, 0, 1, 1], [], []>} : vector<16x32xf32>, vector<32x96xf32>, vector<16x96xf32> -> vector<16x96xf32>
    %c2 = arith.constant 2 : index
    %c0_23 = arith.constant 0 : index
    %34 = vector.load %arg2[%c2, %c0_23] : memref<19x128xf32, #tpu.memory_space<vmem>>, vector<1x96xf32>
    %35 = vector.broadcast %34 : vector<1x96xf32> to vector<16x96xf32>
    %36 = arith.addf %33, %35 : vector<16x96xf32>
    %37 = vector.extract_strided_slice %36 {offsets = [0, 0], sizes = [16, 32], strides = [1, 1]} : vector<16x96xf32> to vector<16x32xf32>
    %38 = vector.extract_strided_slice %36 {offsets = [0, 32], sizes = [16, 32], strides = [1, 1]} : vector<16x96xf32> to vector<16x32xf32>
    %39 = vector.extract_strided_slice %36 {offsets = [0, 64], sizes = [16, 32], strides = [1, 1]} : vector<16x96xf32> to vector<16x32xf32>
    %40 = vector.extract_strided_slice %37 {offsets = [0, 0], sizes = [16, 16], strides = [1, 1]} : vector<16x32xf32> to vector<16x16xf32>
    %41 = vector.shape_cast %40 : vector<16x16xf32> to vector<2x8x16xf32>
    %42 = vector.extract_strided_slice %38 {offsets = [0, 0], sizes = [16, 16], strides = [1, 1]} : vector<16x32xf32> to vector<16x16xf32>
    %43 = vector.shape_cast %42 : vector<16x16xf32> to vector<2x8x16xf32>
    %44 = vector.extract_strided_slice %39 {offsets = [0, 0], sizes = [16, 16], strides = [1, 1]} : vector<16x32xf32> to vector<16x16xf32>
    %45 = vector.shape_cast %44 : vector<16x16xf32> to vector<2x8x16xf32>
    %cst_24 = arith.constant dense<0.000000e+00> : vector<2x8x8xf32>
    %46 = tpu.matmul %41, %43, %cst_24 {dimension_numbers = #tpu.dot_dimension_numbers<[2], [2], [1], [1], [0, 0, 0, 1, 1, 1], [0], [0]>} : vector<2x8x16xf32>, vector<2x8x16xf32>, vector<2x8x8xf32> -> vector<2x8x8xf32>
    %47 = vector.broadcast %24 : vector<2x1x8xf32> to vector<2x8x8xf32>
    %48 = arith.addf %46, %47 : vector<2x8x8xf32>
    %cst_25 = arith.constant dense<0xFF800000> : vector<2x8xf32>
    %49 = vector.multi_reduction <maximumf>, %48, %cst_25 [2] : vector<2x8x8xf32> to vector<2x8xf32>
    %50 = vector.shape_cast %49 : vector<2x8xf32> to vector<2x8x1xf32>
    %51 = vector.broadcast %50 : vector<2x8x1xf32> to vector<2x8x8xf32>
    %52 = arith.subf %48, %51 : vector<2x8x8xf32>
    %53 = math.exp %52 : vector<2x8x8xf32>
    %cst_26 = arith.constant dense<0.000000e+00> : vector<2x8xf32>
    %54 = vector.multi_reduction <add>, %53, %cst_26 [2] : vector<2x8x8xf32> to vector<2x8xf32>
    %55 = vector.shape_cast %54 : vector<2x8xf32> to vector<2x8x1xf32>
    %56 = tpu.reciprocal %55 {approx = true} : vector<2x8x1xf32> -> vector<2x8x1xf32>
    %57 = vector.broadcast %56 : vector<2x8x1xf32> to vector<2x8x8xf32>
    %58 = arith.mulf %53, %57 : vector<2x8x8xf32>
    %cst_27 = arith.constant dense<0.000000e+00> : vector<2x8x16xf32>
    %59 = tpu.matmul %58, %45, %cst_27 {dimension_numbers = #tpu.dot_dimension_numbers<[2], [1], [1], [2], [0, 0, 0, 1, 1, 2], [0], [0]>} : vector<2x8x8xf32>, vector<2x8x16xf32>, vector<2x8x16xf32> -> vector<2x8x16xf32>
    %60 = vector.shape_cast %59 : vector<2x8x16xf32> to vector<16x16xf32>
    %61 = vector.extract_strided_slice %37 {offsets = [0, 16], sizes = [16, 16], strides = [1, 1]} : vector<16x32xf32> to vector<16x16xf32>
    %62 = vector.shape_cast %61 : vector<16x16xf32> to vector<2x8x16xf32>
    %63 = vector.extract_strided_slice %38 {offsets = [0, 16], sizes = [16, 16], strides = [1, 1]} : vector<16x32xf32> to vector<16x16xf32>
    %64 = vector.shape_cast %63 : vector<16x16xf32> to vector<2x8x16xf32>
    %65 = vector.extract_strided_slice %39 {offsets = [0, 16], sizes = [16, 16], strides = [1, 1]} : vector<16x32xf32> to vector<16x16xf32>
    %66 = vector.shape_cast %65 : vector<16x16xf32> to vector<2x8x16xf32>
    %cst_28 = arith.constant dense<0.000000e+00> : vector<2x8x8xf32>
    %67 = tpu.matmul %62, %64, %cst_28 {dimension_numbers = #tpu.dot_dimension_numbers<[2], [2], [1], [1], [0, 0, 0, 1, 1, 1], [0], [0]>} : vector<2x8x16xf32>, vector<2x8x16xf32>, vector<2x8x8xf32> -> vector<2x8x8xf32>
    %68 = vector.broadcast %24 : vector<2x1x8xf32> to vector<2x8x8xf32>
    %69 = arith.addf %67, %68 : vector<2x8x8xf32>
    %cst_29 = arith.constant dense<0xFF800000> : vector<2x8xf32>
    %70 = vector.multi_reduction <maximumf>, %69, %cst_29 [2] : vector<2x8x8xf32> to vector<2x8xf32>
    %71 = vector.shape_cast %70 : vector<2x8xf32> to vector<2x8x1xf32>
    %72 = vector.broadcast %71 : vector<2x8x1xf32> to vector<2x8x8xf32>
    %73 = arith.subf %69, %72 : vector<2x8x8xf32>
    %74 = math.exp %73 : vector<2x8x8xf32>
    %cst_30 = arith.constant dense<0.000000e+00> : vector<2x8xf32>
    %75 = vector.multi_reduction <add>, %74, %cst_30 [2] : vector<2x8x8xf32> to vector<2x8xf32>
    %76 = vector.shape_cast %75 : vector<2x8xf32> to vector<2x8x1xf32>
    %77 = tpu.reciprocal %76 {approx = true} : vector<2x8x1xf32> -> vector<2x8x1xf32>
    %78 = vector.broadcast %77 : vector<2x8x1xf32> to vector<2x8x8xf32>
    %79 = arith.mulf %74, %78 : vector<2x8x8xf32>
    %cst_31 = arith.constant dense<0.000000e+00> : vector<2x8x16xf32>
    %80 = tpu.matmul %79, %66, %cst_31 {dimension_numbers = #tpu.dot_dimension_numbers<[2], [1], [1], [2], [0, 0, 0, 1, 1, 2], [0], [0]>} : vector<2x8x8xf32>, vector<2x8x16xf32>, vector<2x8x16xf32> -> vector<2x8x16xf32>
    %81 = vector.shape_cast %80 : vector<2x8x16xf32> to vector<16x16xf32>
    %82 = tpu.concatenate %60, %81 in 1 : vector<16x16xf32>, vector<16x16xf32> -> vector<16x32xf32>
    %cst_32 = arith.constant dense<0.000000e+00> : vector<16x32xf32>
    %83 = tpu.matmul %82, %28, %cst_32 {dimension_numbers = #tpu.dot_dimension_numbers<[1], [0], [0], [1], [0, 0, 1, 1], [], []>} : vector<16x32xf32>, vector<32x32xf32>, vector<16x32xf32> -> vector<16x32xf32>
    %c3 = arith.constant 3 : index
    %c0_33 = arith.constant 0 : index
    %84 = vector.load %arg2[%c3, %c0_33] : memref<19x128xf32, #tpu.memory_space<vmem>>, vector<1x32xf32>
    %85 = vector.broadcast %84 : vector<1x32xf32> to vector<16x32xf32>
    %86 = arith.addf %83, %85 : vector<16x32xf32>
    %87 = arith.addf %86, %22 : vector<16x32xf32>
    %c4 = arith.constant 4 : index
    %c0_34 = arith.constant 0 : index
    %88 = vector.load %arg2[%c4, %c0_34] : memref<19x128xf32, #tpu.memory_space<vmem>>, vector<1x32xf32>
    %c5 = arith.constant 5 : index
    %c0_35 = arith.constant 0 : index
    %89 = vector.load %arg2[%c5, %c0_35] : memref<19x128xf32, #tpu.memory_space<vmem>>, vector<1x32xf32>
    %cst_36 = arith.constant dense<0.000000e+00> : vector<16xf32>
    %90 = vector.multi_reduction <add>, %87, %cst_36 [1] : vector<16x32xf32> to vector<16xf32>
    %91 = vector.shape_cast %90 : vector<16xf32> to vector<16x1xf32>
    %cst_37 = arith.constant 3.200000e+01 : f32
    %92 = vector.broadcast %cst_37 : f32 to vector<16x1xf32>
    %93 = arith.divf %91, %92 : vector<16x1xf32>
    %94 = vector.broadcast %93 : vector<16x1xf32> to vector<16x32xf32>
    %95 = arith.subf %87, %94 : vector<16x32xf32>
    %96 = arith.mulf %95, %95 : vector<16x32xf32>
    %cst_38 = arith.constant dense<0.000000e+00> : vector<16xf32>
    %97 = vector.multi_reduction <add>, %96, %cst_38 [1] : vector<16x32xf32> to vector<16xf32>
    %98 = vector.shape_cast %97 : vector<16xf32> to vector<16x1xf32>
    %cst_39 = arith.constant 3.200000e+01 : f32
    %99 = vector.broadcast %cst_39 : f32 to vector<16x1xf32>
    %100 = arith.divf %98, %99 : vector<16x1xf32>
    %cst_40 = arith.constant 9.99999996E-13 : f32
    %101 = vector.broadcast %cst_40 : f32 to vector<16x1xf32>
    %102 = arith.addf %100, %101 : vector<16x1xf32>
    %103 = math.rsqrt %102 : vector<16x1xf32>
    %104 = vector.broadcast %103 : vector<16x1xf32> to vector<16x32xf32>
    %105 = arith.mulf %95, %104 : vector<16x32xf32>
    %106 = vector.broadcast %88 : vector<1x32xf32> to vector<16x32xf32>
    %107 = arith.mulf %105, %106 : vector<16x32xf32>
    %108 = vector.broadcast %89 : vector<1x32xf32> to vector<16x32xf32>
    %109 = arith.addf %107, %108 : vector<16x32xf32>
    %cst_41 = arith.constant dense<0.000000e+00> : vector<16x64xf32>
    %110 = tpu.matmul %109, %30, %cst_41 {dimension_numbers = #tpu.dot_dimension_numbers<[1], [0], [0], [1], [0, 0, 1, 1], [], []>} : vector<16x32xf32>, vector<32x64xf32>, vector<16x64xf32> -> vector<16x64xf32>
    %c6 = arith.constant 6 : index
    %c0_42 = arith.constant 0 : index
    %111 = vector.load %arg2[%c6, %c0_42] : memref<19x128xf32, #tpu.memory_space<vmem>>, vector<1x64xf32>
    %112 = vector.broadcast %111 : vector<1x64xf32> to vector<16x64xf32>
    %113 = arith.addf %110, %112 : vector<16x64xf32>
    %114 = arith.mulf %113, %113 : vector<16x64xf32>
    %115 = arith.mulf %113, %114 : vector<16x64xf32>
    %cst_43 = arith.constant 4.471500e-02 : f32
    %116 = vector.broadcast %cst_43 : f32 to vector<16x64xf32>
    %117 = arith.mulf %116, %115 : vector<16x64xf32>
    %118 = arith.addf %113, %117 : vector<16x64xf32>
    %cst_44 = arith.constant 0.797884583 : f32
    %119 = vector.broadcast %cst_44 : f32 to vector<16x64xf32>
    %120 = arith.mulf %119, %118 : vector<16x64xf32>
    %121 = math.tanh %120 : vector<16x64xf32>
    %cst_45 = arith.constant 1.000000e+00 : f32
    %122 = vector.broadcast %cst_45 : f32 to vector<16x64xf32>
    %123 = arith.addf %122, %121 : vector<16x64xf32>
    %cst_46 = arith.constant 5.000000e-01 : f32
    %124 = vector.broadcast %cst_46 : f32 to vector<16x64xf32>
    %125 = arith.mulf %124, %123 : vector<16x64xf32>
    %126 = arith.mulf %113, %125 : vector<16x64xf32>
    %cst_47 = arith.constant dense<0.000000e+00> : vector<16x32xf32>
    %127 = tpu.matmul %126, %32, %cst_47 {dimension_numbers = #tpu.dot_dimension_numbers<[1], [0], [0], [1], [0, 0, 1, 1], [], []>} : vector<16x64xf32>, vector<64x32xf32>, vector<16x32xf32> -> vector<16x32xf32>
    %c7 = arith.constant 7 : index
    %c0_48 = arith.constant 0 : index
    %128 = vector.load %arg2[%c7, %c0_48] : memref<19x128xf32, #tpu.memory_space<vmem>>, vector<1x32xf32>
    %129 = vector.broadcast %128 : vector<1x32xf32> to vector<16x32xf32>
    %130 = arith.addf %127, %129 : vector<16x32xf32>
    %131 = arith.addf %130, %109 : vector<16x32xf32>
    %c8 = arith.constant 8 : index
    %c0_49 = arith.constant 0 : index
    %132 = vector.load %arg2[%c8, %c0_49] : memref<19x128xf32, #tpu.memory_space<vmem>>, vector<1x32xf32>
    %c9 = arith.constant 9 : index
    %c0_50 = arith.constant 0 : index
    %133 = vector.load %arg2[%c9, %c0_50] : memref<19x128xf32, #tpu.memory_space<vmem>>, vector<1x32xf32>
    %cst_51 = arith.constant dense<0.000000e+00> : vector<16xf32>
    %134 = vector.multi_reduction <add>, %131, %cst_51 [1] : vector<16x32xf32> to vector<16xf32>
    %135 = vector.shape_cast %134 : vector<16xf32> to vector<16x1xf32>
    %cst_52 = arith.constant 3.200000e+01 : f32
    %136 = vector.broadcast %cst_52 : f32 to vector<16x1xf32>
    %137 = arith.divf %135, %136 : vector<16x1xf32>
    %138 = vector.broadcast %137 : vector<16x1xf32> to vector<16x32xf32>
    %139 = arith.subf %131, %138 : vector<16x32xf32>
    %140 = arith.mulf %139, %139 : vector<16x32xf32>
    %cst_53 = arith.constant dense<0.000000e+00> : vector<16xf32>
    %141 = vector.multi_reduction <add>, %140, %cst_53 [1] : vector<16x32xf32> to vector<16xf32>
    %142 = vector.shape_cast %141 : vector<16xf32> to vector<16x1xf32>
    %cst_54 = arith.constant 3.200000e+01 : f32
    %143 = vector.broadcast %cst_54 : f32 to vector<16x1xf32>
    %144 = arith.divf %142, %143 : vector<16x1xf32>
    %cst_55 = arith.constant 9.99999996E-13 : f32
    %145 = vector.broadcast %cst_55 : f32 to vector<16x1xf32>
    %146 = arith.addf %144, %145 : vector<16x1xf32>
    %147 = math.rsqrt %146 : vector<16x1xf32>
    %148 = vector.broadcast %147 : vector<16x1xf32> to vector<16x32xf32>
    %149 = arith.mulf %139, %148 : vector<16x32xf32>
    %150 = vector.broadcast %132 : vector<1x32xf32> to vector<16x32xf32>
    %151 = arith.mulf %149, %150 : vector<16x32xf32>
    %152 = vector.broadcast %133 : vector<1x32xf32> to vector<16x32xf32>
    %153 = arith.addf %151, %152 : vector<16x32xf32>
    %c1_56 = arith.constant 1 : index
    %c0_57 = arith.constant 0 : index
    %c0_58 = arith.constant 0 : index
    %154 = vector.load %arg3[%c1_56, %c0_57, %c0_58] : memref<2x32x96xf32, #tpu.memory_space<vmem>>, vector<1x32x96xf32>
    %155 = vector.shape_cast %154 : vector<1x32x96xf32> to vector<32x96xf32>
    %c1_59 = arith.constant 1 : index
    %c0_60 = arith.constant 0 : index
    %c0_61 = arith.constant 0 : index
    %156 = vector.load %arg4[%c1_59, %c0_60, %c0_61] : memref<2x32x32xf32, #tpu.memory_space<vmem>>, vector<1x32x32xf32>
    %157 = vector.shape_cast %156 : vector<1x32x32xf32> to vector<32x32xf32>
    %c1_62 = arith.constant 1 : index
    %c0_63 = arith.constant 0 : index
    %c0_64 = arith.constant 0 : index
    %158 = vector.load %arg5[%c1_62, %c0_63, %c0_64] : memref<2x32x64xf32, #tpu.memory_space<vmem>>, vector<1x32x64xf32>
    %159 = vector.shape_cast %158 : vector<1x32x64xf32> to vector<32x64xf32>
    %c1_65 = arith.constant 1 : index
    %c0_66 = arith.constant 0 : index
    %c0_67 = arith.constant 0 : index
    %160 = vector.load %arg6[%c1_65, %c0_66, %c0_67] : memref<2x64x32xf32, #tpu.memory_space<vmem>>, vector<1x64x32xf32>
    %161 = vector.shape_cast %160 : vector<1x64x32xf32> to vector<64x32xf32>
    %cst_68 = arith.constant dense<0.000000e+00> : vector<16x96xf32>
    %162 = tpu.matmul %153, %155, %cst_68 {dimension_numbers = #tpu.dot_dimension_numbers<[1], [0], [0], [1], [0, 0, 1, 1], [], []>} : vector<16x32xf32>, vector<32x96xf32>, vector<16x96xf32> -> vector<16x96xf32>
    %c10 = arith.constant 10 : index
    %c0_69 = arith.constant 0 : index
    %163 = vector.load %arg2[%c10, %c0_69] : memref<19x128xf32, #tpu.memory_space<vmem>>, vector<1x96xf32>
    %164 = vector.broadcast %163 : vector<1x96xf32> to vector<16x96xf32>
    %165 = arith.addf %162, %164 : vector<16x96xf32>
    %166 = vector.extract_strided_slice %165 {offsets = [0, 0], sizes = [16, 32], strides = [1, 1]} : vector<16x96xf32> to vector<16x32xf32>
    %167 = vector.extract_strided_slice %165 {offsets = [0, 32], sizes = [16, 32], strides = [1, 1]} : vector<16x96xf32> to vector<16x32xf32>
    %168 = vector.extract_strided_slice %165 {offsets = [0, 64], sizes = [16, 32], strides = [1, 1]} : vector<16x96xf32> to vector<16x32xf32>
    %169 = vector.extract_strided_slice %166 {offsets = [0, 0], sizes = [16, 16], strides = [1, 1]} : vector<16x32xf32> to vector<16x16xf32>
    %170 = vector.shape_cast %169 : vector<16x16xf32> to vector<2x8x16xf32>
    %171 = vector.extract_strided_slice %167 {offsets = [0, 0], sizes = [16, 16], strides = [1, 1]} : vector<16x32xf32> to vector<16x16xf32>
    %172 = vector.shape_cast %171 : vector<16x16xf32> to vector<2x8x16xf32>
    %173 = vector.extract_strided_slice %168 {offsets = [0, 0], sizes = [16, 16], strides = [1, 1]} : vector<16x32xf32> to vector<16x16xf32>
    %174 = vector.shape_cast %173 : vector<16x16xf32> to vector<2x8x16xf32>
    %cst_70 = arith.constant dense<0.000000e+00> : vector<2x8x8xf32>
    %175 = tpu.matmul %170, %172, %cst_70 {dimension_numbers = #tpu.dot_dimension_numbers<[2], [2], [1], [1], [0, 0, 0, 1, 1, 1], [0], [0]>} : vector<2x8x16xf32>, vector<2x8x16xf32>, vector<2x8x8xf32> -> vector<2x8x8xf32>
    %176 = vector.broadcast %24 : vector<2x1x8xf32> to vector<2x8x8xf32>
    %177 = arith.addf %175, %176 : vector<2x8x8xf32>
    %cst_71 = arith.constant dense<0xFF800000> : vector<2x8xf32>
    %178 = vector.multi_reduction <maximumf>, %177, %cst_71 [2] : vector<2x8x8xf32> to vector<2x8xf32>
    %179 = vector.shape_cast %178 : vector<2x8xf32> to vector<2x8x1xf32>
    %180 = vector.broadcast %179 : vector<2x8x1xf32> to vector<2x8x8xf32>
    %181 = arith.subf %177, %180 : vector<2x8x8xf32>
    %182 = math.exp %181 : vector<2x8x8xf32>
    %cst_72 = arith.constant dense<0.000000e+00> : vector<2x8xf32>
    %183 = vector.multi_reduction <add>, %182, %cst_72 [2] : vector<2x8x8xf32> to vector<2x8xf32>
    %184 = vector.shape_cast %183 : vector<2x8xf32> to vector<2x8x1xf32>
    %185 = tpu.reciprocal %184 {approx = true} : vector<2x8x1xf32> -> vector<2x8x1xf32>
    %186 = vector.broadcast %185 : vector<2x8x1xf32> to vector<2x8x8xf32>
    %187 = arith.mulf %182, %186 : vector<2x8x8xf32>
    %cst_73 = arith.constant dense<0.000000e+00> : vector<2x8x16xf32>
    %188 = tpu.matmul %187, %174, %cst_73 {dimension_numbers = #tpu.dot_dimension_numbers<[2], [1], [1], [2], [0, 0, 0, 1, 1, 2], [0], [0]>} : vector<2x8x8xf32>, vector<2x8x16xf32>, vector<2x8x16xf32> -> vector<2x8x16xf32>
    %189 = vector.shape_cast %188 : vector<2x8x16xf32> to vector<16x16xf32>
    %190 = vector.extract_strided_slice %166 {offsets = [0, 16], sizes = [16, 16], strides = [1, 1]} : vector<16x32xf32> to vector<16x16xf32>
    %191 = vector.shape_cast %190 : vector<16x16xf32> to vector<2x8x16xf32>
    %192 = vector.extract_strided_slice %167 {offsets = [0, 16], sizes = [16, 16], strides = [1, 1]} : vector<16x32xf32> to vector<16x16xf32>
    %193 = vector.shape_cast %192 : vector<16x16xf32> to vector<2x8x16xf32>
    %194 = vector.extract_strided_slice %168 {offsets = [0, 16], sizes = [16, 16], strides = [1, 1]} : vector<16x32xf32> to vector<16x16xf32>
    %195 = vector.shape_cast %194 : vector<16x16xf32> to vector<2x8x16xf32>
    %cst_74 = arith.constant dense<0.000000e+00> : vector<2x8x8xf32>
    %196 = tpu.matmul %191, %193, %cst_74 {dimension_numbers = #tpu.dot_dimension_numbers<[2], [2], [1], [1], [0, 0, 0, 1, 1, 1], [0], [0]>} : vector<2x8x16xf32>, vector<2x8x16xf32>, vector<2x8x8xf32> -> vector<2x8x8xf32>
    %197 = vector.broadcast %24 : vector<2x1x8xf32> to vector<2x8x8xf32>
    %198 = arith.addf %196, %197 : vector<2x8x8xf32>
    %cst_75 = arith.constant dense<0xFF800000> : vector<2x8xf32>
    %199 = vector.multi_reduction <maximumf>, %198, %cst_75 [2] : vector<2x8x8xf32> to vector<2x8xf32>
    %200 = vector.shape_cast %199 : vector<2x8xf32> to vector<2x8x1xf32>
    %201 = vector.broadcast %200 : vector<2x8x1xf32> to vector<2x8x8xf32>
    %202 = arith.subf %198, %201 : vector<2x8x8xf32>
    %203 = math.exp %202 : vector<2x8x8xf32>
    %cst_76 = arith.constant dense<0.000000e+00> : vector<2x8xf32>
    %204 = vector.multi_reduction <add>, %203, %cst_76 [2] : vector<2x8x8xf32> to vector<2x8xf32>
    %205 = vector.shape_cast %204 : vector<2x8xf32> to vector<2x8x1xf32>
    %206 = tpu.reciprocal %205 {approx = true} : vector<2x8x1xf32> -> vector<2x8x1xf32>
    %207 = vector.broadcast %206 : vector<2x8x1xf32> to vector<2x8x8xf32>
    %208 = arith.mulf %203, %207 : vector<2x8x8xf32>
    %cst_77 = arith.constant dense<0.000000e+00> : vector<2x8x16xf32>
    %209 = tpu.matmul %208, %195, %cst_77 {dimension_numbers = #tpu.dot_dimension_numbers<[2], [1], [1], [2], [0, 0, 0, 1, 1, 2], [0], [0]>} : vector<2x8x8xf32>, vector<2x8x16xf32>, vector<2x8x16xf32> -> vector<2x8x16xf32>
    %210 = vector.shape_cast %209 : vector<2x8x16xf32> to vector<16x16xf32>
    %211 = tpu.concatenate %189, %210 in 1 : vector<16x16xf32>, vector<16x16xf32> -> vector<16x32xf32>
    %cst_78 = arith.constant dense<0.000000e+00> : vector<16x32xf32>
    %212 = tpu.matmul %211, %157, %cst_78 {dimension_numbers = #tpu.dot_dimension_numbers<[1], [0], [0], [1], [0, 0, 1, 1], [], []>} : vector<16x32xf32>, vector<32x32xf32>, vector<16x32xf32> -> vector<16x32xf32>
    %c11 = arith.constant 11 : index
    %c0_79 = arith.constant 0 : index
    %213 = vector.load %arg2[%c11, %c0_79] : memref<19x128xf32, #tpu.memory_space<vmem>>, vector<1x32xf32>
    %214 = vector.broadcast %213 : vector<1x32xf32> to vector<16x32xf32>
    %215 = arith.addf %212, %214 : vector<16x32xf32>
    %216 = arith.addf %215, %153 : vector<16x32xf32>
    %c12 = arith.constant 12 : index
    %c0_80 = arith.constant 0 : index
    %217 = vector.load %arg2[%c12, %c0_80] : memref<19x128xf32, #tpu.memory_space<vmem>>, vector<1x32xf32>
    %c13 = arith.constant 13 : index
    %c0_81 = arith.constant 0 : index
    %218 = vector.load %arg2[%c13, %c0_81] : memref<19x128xf32, #tpu.memory_space<vmem>>, vector<1x32xf32>
    %cst_82 = arith.constant dense<0.000000e+00> : vector<16xf32>
    %219 = vector.multi_reduction <add>, %216, %cst_82 [1] : vector<16x32xf32> to vector<16xf32>
    %220 = vector.shape_cast %219 : vector<16xf32> to vector<16x1xf32>
    %cst_83 = arith.constant 3.200000e+01 : f32
    %221 = vector.broadcast %cst_83 : f32 to vector<16x1xf32>
    %222 = arith.divf %220, %221 : vector<16x1xf32>
    %223 = vector.broadcast %222 : vector<16x1xf32> to vector<16x32xf32>
    %224 = arith.subf %216, %223 : vector<16x32xf32>
    %225 = arith.mulf %224, %224 : vector<16x32xf32>
    %cst_84 = arith.constant dense<0.000000e+00> : vector<16xf32>
    %226 = vector.multi_reduction <add>, %225, %cst_84 [1] : vector<16x32xf32> to vector<16xf32>
    %227 = vector.shape_cast %226 : vector<16xf32> to vector<16x1xf32>
    %cst_85 = arith.constant 3.200000e+01 : f32
    %228 = vector.broadcast %cst_85 : f32 to vector<16x1xf32>
    %229 = arith.divf %227, %228 : vector<16x1xf32>
    %cst_86 = arith.constant 9.99999996E-13 : f32
    %230 = vector.broadcast %cst_86 : f32 to vector<16x1xf32>
    %231 = arith.addf %229, %230 : vector<16x1xf32>
    %232 = math.rsqrt %231 : vector<16x1xf32>
    %233 = vector.broadcast %232 : vector<16x1xf32> to vector<16x32xf32>
    %234 = arith.mulf %224, %233 : vector<16x32xf32>
    %235 = vector.broadcast %217 : vector<1x32xf32> to vector<16x32xf32>
    %236 = arith.mulf %234, %235 : vector<16x32xf32>
    %237 = vector.broadcast %218 : vector<1x32xf32> to vector<16x32xf32>
    %238 = arith.addf %236, %237 : vector<16x32xf32>
    %cst_87 = arith.constant dense<0.000000e+00> : vector<16x64xf32>
    %239 = tpu.matmul %238, %159, %cst_87 {dimension_numbers = #tpu.dot_dimension_numbers<[1], [0], [0], [1], [0, 0, 1, 1], [], []>} : vector<16x32xf32>, vector<32x64xf32>, vector<16x64xf32> -> vector<16x64xf32>
    %c14 = arith.constant 14 : index
    %c0_88 = arith.constant 0 : index
    %240 = vector.load %arg2[%c14, %c0_88] : memref<19x128xf32, #tpu.memory_space<vmem>>, vector<1x64xf32>
    %241 = vector.broadcast %240 : vector<1x64xf32> to vector<16x64xf32>
    %242 = arith.addf %239, %241 : vector<16x64xf32>
    %243 = arith.mulf %242, %242 : vector<16x64xf32>
    %244 = arith.mulf %242, %243 : vector<16x64xf32>
    %cst_89 = arith.constant 4.471500e-02 : f32
    %245 = vector.broadcast %cst_89 : f32 to vector<16x64xf32>
    %246 = arith.mulf %245, %244 : vector<16x64xf32>
    %247 = arith.addf %242, %246 : vector<16x64xf32>
    %cst_90 = arith.constant 0.797884583 : f32
    %248 = vector.broadcast %cst_90 : f32 to vector<16x64xf32>
    %249 = arith.mulf %248, %247 : vector<16x64xf32>
    %250 = math.tanh %249 : vector<16x64xf32>
    %cst_91 = arith.constant 1.000000e+00 : f32
    %251 = vector.broadcast %cst_91 : f32 to vector<16x64xf32>
    %252 = arith.addf %251, %250 : vector<16x64xf32>
    %cst_92 = arith.constant 5.000000e-01 : f32
    %253 = vector.broadcast %cst_92 : f32 to vector<16x64xf32>
    %254 = arith.mulf %253, %252 : vector<16x64xf32>
    %255 = arith.mulf %242, %254 : vector<16x64xf32>
    %cst_93 = arith.constant dense<0.000000e+00> : vector<16x32xf32>
    %256 = tpu.matmul %255, %161, %cst_93 {dimension_numbers = #tpu.dot_dimension_numbers<[1], [0], [0], [1], [0, 0, 1, 1], [], []>} : vector<16x64xf32>, vector<64x32xf32>, vector<16x32xf32> -> vector<16x32xf32>
    %c15 = arith.constant 15 : index
    %c0_94 = arith.constant 0 : index
    %257 = vector.load %arg2[%c15, %c0_94] : memref<19x128xf32, #tpu.memory_space<vmem>>, vector<1x32xf32>
    %258 = vector.broadcast %257 : vector<1x32xf32> to vector<16x32xf32>
    %259 = arith.addf %256, %258 : vector<16x32xf32>
    %260 = arith.addf %259, %238 : vector<16x32xf32>
    %c16 = arith.constant 16 : index
    %c0_95 = arith.constant 0 : index
    %261 = vector.load %arg2[%c16, %c0_95] : memref<19x128xf32, #tpu.memory_space<vmem>>, vector<1x32xf32>
    %c17 = arith.constant 17 : index
    %c0_96 = arith.constant 0 : index
    %262 = vector.load %arg2[%c17, %c0_96] : memref<19x128xf32, #tpu.memory_space<vmem>>, vector<1x32xf32>
    %cst_97 = arith.constant dense<0.000000e+00> : vector<16xf32>
    %263 = vector.multi_reduction <add>, %260, %cst_97 [1] : vector<16x32xf32> to vector<16xf32>
    %264 = vector.shape_cast %263 : vector<16xf32> to vector<16x1xf32>
    %cst_98 = arith.constant 3.200000e+01 : f32
    %265 = vector.broadcast %cst_98 : f32 to vector<16x1xf32>
    %266 = arith.divf %264, %265 : vector<16x1xf32>
    %267 = vector.broadcast %266 : vector<16x1xf32> to vector<16x32xf32>
    %268 = arith.subf %260, %267 : vector<16x32xf32>
    %269 = arith.mulf %268, %268 : vector<16x32xf32>
    %cst_99 = arith.constant dense<0.000000e+00> : vector<16xf32>
    %270 = vector.multi_reduction <add>, %269, %cst_99 [1] : vector<16x32xf32> to vector<16xf32>
    %271 = vector.shape_cast %270 : vector<16xf32> to vector<16x1xf32>
    %cst_100 = arith.constant 3.200000e+01 : f32
    %272 = vector.broadcast %cst_100 : f32 to vector<16x1xf32>
    %273 = arith.divf %271, %272 : vector<16x1xf32>
    %cst_101 = arith.constant 9.99999996E-13 : f32
    %274 = vector.broadcast %cst_101 : f32 to vector<16x1xf32>
    %275 = arith.addf %273, %274 : vector<16x1xf32>
    %276 = math.rsqrt %275 : vector<16x1xf32>
    %277 = vector.broadcast %276 : vector<16x1xf32> to vector<16x32xf32>
    %278 = arith.mulf %268, %277 : vector<16x32xf32>
    %279 = vector.broadcast %261 : vector<1x32xf32> to vector<16x32xf32>
    %280 = arith.mulf %278, %279 : vector<16x32xf32>
    %281 = vector.broadcast %262 : vector<1x32xf32> to vector<16x32xf32>
    %282 = arith.addf %280, %281 : vector<16x32xf32>
    %c0_102 = arith.constant 0 : index
    %c0_103 = arith.constant 0 : index
    %283 = vector.load %arg7[%c0_102, %c0_103] : memref<32x128xf32, #tpu.memory_space<vmem>>, vector<32x128xf32>
    %cst_104 = arith.constant dense<0.000000e+00> : vector<16x128xf32>
    %284 = tpu.matmul %282, %283, %cst_104 {dimension_numbers = #tpu.dot_dimension_numbers<[1], [0], [0], [1], [0, 0, 1, 1], [], []>} : vector<16x32xf32>, vector<32x128xf32>, vector<16x128xf32> -> vector<16x128xf32>
    %c18 = arith.constant 18 : index
    %c0_105 = arith.constant 0 : index
    %285 = vector.load %arg2[%c18, %c0_105] : memref<19x128xf32, #tpu.memory_space<vmem>>, vector<1x128xf32>
    %286 = vector.broadcast %285 : vector<1x128xf32> to vector<16x128xf32>
    %287 = arith.addf %284, %286 : vector<16x128xf32>
    %c0_106 = arith.constant 0 : index
    %c0_107 = arith.constant 0 : index
    %288 = vector.load %arg8[%c0_106, %c0_107] : memref<16x128xf32, #tpu.memory_space<vmem>>, vector<16x128xf32>
    tpu.vector_store %arg8[%c0_106, %c0_107], %287 {strides = array<i32>} : memref<16x128xf32, #tpu.memory_space<vmem>>, vector<16x128xf32>,
    return
  }
}

</mosaic_0001>

<llo_original>
// kernel: tpu_custom_call.1
$region0: #{tpu_custom_call.1}
  #allocation0 [shape = 'u32[]', space=smem, size = 0x4, offset = 0x4, fixed_abs, tag = 'smem constant byte address 0x4 - core index']
  #allocation1 [shape = 'u32[72,128]{1,0:T(1,128)}', space=vmem, size = 0x9000, scoped, tag = 'internal scratch']
  %s0 = inlined_call_operand.hbm [shape: f32[16,32], index: 0, kind: input, shape index: {}]
  %s1 = inlined_call_operand.hbm [shape: f32[2,8], index: 1, kind: input, shape index: {}]
  %s2 = inlined_call_operand.hbm [shape: f32[19,128], index: 2, kind: input, shape index: {}]
  %s3 = inlined_call_operand.vmem [shape: f32[2,32,96], index: 3, kind: input, shape index: {}]
  %s4 = inlined_call_operand.vmem [shape: f32[2,32,32], index: 4, kind: input, shape index: {}]
  %s5 = inlined_call_operand.vmem [shape: f32[2,32,64], index: 5, kind: input, shape index: {}]
  %s6 = inlined_call_operand.vmem [shape: f32[2,64,32], index: 6, kind: input, shape index: {}]
  %s7 = inlined_call_operand.hbm [shape: f32[32,128], index: 7, kind: input, shape index: {}]
  %s8 = inlined_call_operand.hbm [shape: f32[16,128], index: 8, kind: output, shape index: {}]
  %s9 = sld [smem:[#allocation0]]
  $region58: #{tpu_custom_call.1} parent=0
    _
  %s11 = ssub.s32 1, %s9
  %s12 = scalar_select 0, %s11, %s9
  $region1: #{tpu_custom_call.1} parent=0
    #allocation2 [shape = 'u8[8192]{0}', space=vmem, size = 0x2000, scoped, tag = 'input window, operand 0, single buffered']
    #allocation3 [shape = 's32[1]{0}', space=sflag, size = 0x4, scoped, tag = 'scoped memory for tpu_custom_call.1']
    #allocation4 [shape = 's32[1]{0}', space=sflag, size = 0x4, scoped, tag = 'scoped memory for tpu_custom_call.1']
    #allocation5 [shape = 'u8[1024]{0}', space=vmem, size = 0x400, scoped, tag = 'input window, operand 1, single buffered']
    #allocation6 [shape = 's32[1]{0}', space=sflag, size = 0x4, scoped, tag = 'scoped memory for tpu_custom_call.1']
    #allocation7 [shape = 'u8[12288]{0}', space=vmem, size = 0x3000, scoped, tag = 'input window, operand 2, single buffered']
    #allocation8 [shape = 'u8[16384]{0}', space=vmem, size = 0x4000, scoped, tag = 'input window, operand 7, single buffered']
    #allocation9 [shape = 's32[1]{0}', space=sflag, size = 0x4, scoped, tag = 'scoped memory for tpu_custom_call.1']
    #allocation10 [shape = 'u8[8192]{0}', space=vmem, size = 0x2000, scoped, tag = 'output window, operand 0, single buffered']
    %13 = vsyncpa [#allocation3], 0
    %14 = vsyncpa [#allocation6], 0
    %15 = vsyncpa [#allocation9], 0
    %16 = vsyncpa [#allocation4], 0
    // Predicated region
    $region2: #{tpu_custom_call.1} parent=1 // pred_check
      _
    $region3: #{tpu_custom_call.1} parent=1 // pred_check_branch
      %18 = sbr.rel (0) target = $region5
    $region4: #{tpu_custom_call.1} parent=1 // pred_region
      %20 = vsyncadd [#allocation3], 0
      %s21 = sshll.u32 %s0, 4
      %s22 = int_to_ptr.hbm [resolvable:$true] %s21
      %s23 = sshll.u32 [#allocation2], 4
      %s24 = int_to_ptr.vmem [resolvable:$true] %s23
      %29 = dma.hbm_to_vmem [thread:$0]  %s22, 256, %s24, [#allocation3], 128, 128, 8
    $region5: #{tpu_custom_call.1} parent=1 // pred_fallthru
      _
    // Predicated region
    $region6: #{tpu_custom_call.1} parent=1 // pred_check
      _
    $region7: #{tpu_custom_call.1} parent=1 // pred_check_branch
      %31 = sbr.rel (0) target = $region9
    $region8: #{tpu_custom_call.1} parent=1 // pred_region
      %33 = vsyncadd [#allocation6], 0
      %s35 = sshll.u32 %s1, 4
      %s36 = int_to_ptr.hbm [resolvable:$true] %s35
      %s37 = sshll.u32 [#allocation5], 4
      %s38 = int_to_ptr.vmem [resolvable:$true] %s37
      %40 = dma.hbm_to_vmem [thread:$0]  %s36, 32, %s38, [#allocation6]
    $region9: #{tpu_custom_call.1} parent=1 // pred_fallthru
      _
    // Predicated region
    $region10: #{tpu_custom_call.1} parent=1 // pred_check
      _
    $region11: #{tpu_custom_call.1} parent=1 // pred_check_branch
      %42 = sbr.rel (0) target = $region13
    $region12: #{tpu_custom_call.1} parent=1 // pred_region
      %44 = vsyncadd [#allocation6], 0
      %s45 = sshll.u32 %s2, 4
      %s46 = int_to_ptr.hbm [resolvable:$true] %s45
      %s47 = sshll.u32 [#allocation7], 4
      %s48 = int_to_ptr.vmem [resolvable:$true] %s47
      %53 = dma.hbm_to_vmem [thread:$0]  %s46, 384, %s48, [#allocation6], 128, 128, 8
    $region13: #{tpu_custom_call.1} parent=1 // pred_fallthru
      _
    // Predicated region
    $region14: #{tpu_custom_call.1} parent=1 // pred_check
      _
    $region15: #{tpu_custom_call.1} parent=1 // pred_check_branch
      %55 = sbr.rel (0) target = $region17
    $region16: #{tpu_custom_call.1} parent=1 // pred_region
      _
    $region17: #{tpu_custom_call.1} parent=1 // pred_fallthru
      _
    // Predicated region
    $region18: #{tpu_custom_call.1} parent=1 // pred_check
      _
    $region19: #{tpu_custom_call.1} parent=1 // pred_check_branch
      %57 = sbr.rel (0) target = $region21
    $region20: #{tpu_custom_call.1} parent=1 // pred_region
      _
    $region21: #{tpu_custom_call.1} parent=1 // pred_fallthru
      _
    // Predicated region
    $region22: #{tpu_custom_call.1} parent=1 // pred_check
      _
    $region23: #{tpu_custom_call.1} parent=1 // pred_check_branch
      %59 = sbr.rel (0) target = $region25
    $region24: #{tpu_custom_call.1} parent=1 // pred_region
      _
    $region25: #{tpu_custom_call.1} parent=1 // pred_fallthru
      _
    // Predicated region
    $region26: #{tpu_custom_call.1} parent=1 // pred_check
      _
    $region27: #{tpu_custom_call.1} parent=1 // pred_check_branch
      %61 = sbr.rel (0) target = $region29
    $region28: #{tpu_custom_call.1} parent=1 // pred_region
      _
    $region29: #{tpu_custom_call.1} parent=1 // pred_fallthru
      _
    // Predicated region
    $region30: #{tpu_custom_call.1} parent=1 // pred_check
      _
    $region31: #{tpu_custom_call.1} parent=1 // pred_check_branch
      %63 = sbr.rel (0) target = $region33
    $region32: #{tpu_custom_call.1} parent=1 // pred_region
      %65 = vsyncadd [#allocation9], 0
      %s66 = sshll.u32 %s7, 4
      %s67 = int_to_ptr.hbm [resolvable:$true] %s66
      %s68 = sshll.u32 [#allocation8], 4
      %s69 = int_to_ptr.vmem [resolvable:$true] %s68
      %74 = dma.hbm_to_vmem [thread:$0]  %s67, 512, %s69, [#allocation9], 128, 128, 8
    $region33: #{tpu_custom_call.1} parent=1 // pred_fallthru
      _
    // Predicated region
    $region34: #{tpu_custom_call.1} parent=1 // pred_check
      _
    $region35: #{tpu_custom_call.1} parent=1 // pred_check_branch
      %76 = sbr.rel (0) target = $region37
    $region36: #{tpu_custom_call.1} parent=1 // pred_region
      %78 = dma.done [#allocation3], 256
    $region37: #{tpu_custom_call.1} parent=1 // pred_fallthru
      _
    // Predicated region
    $region38: #{tpu_custom_call.1} parent=1 // pred_check
      _
    $region39: #{tpu_custom_call.1} parent=1 // pred_check_branch
      %80 = sbr.rel (0) target = $region41
    $region40: #{tpu_custom_call.1} parent=1 // pred_region
      %82 = dma.done [#allocation6], 32
    $region41: #{tpu_custom_call.1} parent=1 // pred_fallthru
      _
    // Predicated region
    $region42: #{tpu_custom_call.1} parent=1 // pred_check
      _
    $region43: #{tpu_custom_call.1} parent=1 // pred_check_branch
      %84 = sbr.rel (0) target = $region45
    $region44: #{tpu_custom_call.1} parent=1 // pred_region
      %86 = dma.done [#allocation6], 384
    $region45: #{tpu_custom_call.1} parent=1 // pred_fallthru
      _
    // Predicated region
    $region46: #{tpu_custom_call.1} parent=1 // pred_check
      _
    $region47: #{tpu_custom_call.1} parent=1 // pred_check_branch
      %88 = sbr.rel (0) target = $region49
    $region48: #{tpu_custom_call.1} parent=1 // pred_region
      %90 = dma.done [#allocation9], 512
    $region49: #{tpu_custom_call.1} parent=1 // pred_fallthru
      _
    %v91 = vld [vmem:[#allocation2] sm:$0xff]
    %v92 = vld [vmem:[#allocation2 + $0x8] sm:$0xff]
    %v93 = vld [vmem:[#allocation7] sm:$0x1]
    %v94 = vld [vmem:[#allocation7 + $0x1] sm:$0x1]
    %vm95 = vcmask 261120
    %v96 = vsel %vm95, %v91, 0.0
    %97 = vadd.xlane.f32.xlu0 %v96
    %v98 = vpop.xlane.xlu0 %97
    %v99 = vsel %vm95, %v92, 0.0
    %100 = vadd.xlane.f32.xlu0 %v99
    %v101 = vpop.xlane.xlu0 %100
    %v102 = vrcp.pop 32.0
    %v103 = vmul.f32 32.0, %v102
    %v104 = vsub.f32 1.0, %v103
    %v105 = vmul.f32 %v102, %v104
    %v106 = vadd.f32 %v102, %v105
    %vm107 = vweird.f32 %v102
    %v108 = vsel %vm107, %v102, %v106
    %v109 = vmul.f32 %v98, %v108
    %v110 = vmul.f32 %v101, %v108
    %v111 = vsub.f32 %v91, %v109
    %v112 = vsub.f32 %v92, %v110
    %v113 = vmul.f32 %v111, %v111
    %v114 = vmul.f32 %v112, %v112
    %v115 = vsel %vm95, %v113, 0.0
    %116 = vadd.xlane.f32.xlu0 %v115
    %v117 = vpop.xlane.xlu0 %116
    %v118 = vsel %vm95, %v114, 0.0
    %119 = vadd.xlane.f32.xlu0 %v118
    %v120 = vpop.xlane.xlu0 %119
    %v121 = vmul.f32 %v117, %v108
    %v122 = vmul.f32 %v120, %v108
    %v123 = vadd.f32 %v121, 1e-12
    %v124 = vadd.f32 %v122, 1e-12
    %v125 = vrsqrt.pop %v123
    %v126 = vmul.f32 %v125, %v123
    %v127 = vmul.f32 %v126, %v125
    %v128 = vmul.f32 0.5, %v127
    %v129 = vsub.f32 1.5, %v128
    %v130 = vmul.f32 %v125, %v129
    %vm131 = vweird.f32 %v123
    %vm132 = vweird.f32 %v125
    %vm133 = vmor %vm131, %vm132
    %v134 = vsel %vm133, %v125, %v130
    %v135 = vrsqrt.pop %v124
    %v136 = vmul.f32 %v135, %v124
    %v137 = vmul.f32 %v136, %v135
    %v138 = vmul.f32 0.5, %v137
    %v139 = vsub.f32 1.5, %v138
    %v140 = vmul.f32 %v135, %v139
    %vm141 = vweird.f32 %v124
    %vm142 = vweird.f32 %v135
    %vm143 = vmor %vm141, %vm142
    %v144 = vsel %vm143, %v135, %v140
    %v145 = vmul.f32 %v111, %v134
    %v146 = vmul.f32 %v112, %v144
    %v147 = vperm.slane %v93, 0
    %v148 = vmul.f32 %v145, %v147
    %v149 = vmul.f32 %v146, %v147
    %v150 = vperm.slane %v94, 0
    %v151 = vadd.f32 %v148, %v150
    %v152 = vadd.f32 %v149, %v150
    %v153 = vld [vmem:[#allocation5] sm:$0x3]
    %v155 = vrot.slane %v153, 1
    %v156 = vld [vmem:[%s3] sm:$0xff]
    %v157 = vld [vmem:[%s3 + $0x8] sm:$0xff]
    %v158 = vld [vmem:[%s3 + $0x10] sm:$0xff]
    %v159 = vld [vmem:[%s3 + $0x18] sm:$0xff]
    %v160 = vld [vmem:[%s4] sm:$0xff]
    %v161 = vld [vmem:[%s4 + $0x8] sm:$0xff]
    %v162 = vld [vmem:[%s4 + $0x10] sm:$0xff]
    %v163 = vld [vmem:[%s4 + $0x18] sm:$0xff]
    %v164 = vld [vmem:[%s5] sm:$0xff]
    %v165 = vld [vmem:[%s5 + $0x8] sm:$0xff]
    %v166 = vld [vmem:[%s5 + $0x10] sm:$0xff]
    %v167 = vld [vmem:[%s5 + $0x18] sm:$0xff]
    %v168 = vld [vmem:[%s6] sm:$0xff]
    %v169 = vld [vmem:[%s6 + $0x8] sm:$0xff]
    %v170 = vld [vmem:[%s6 + $0x10] sm:$0xff]
    %v171 = vld [vmem:[%s6 + $0x18] sm:$0xff]
    %v172 = vld [vmem:[%s6 + $0x20] sm:$0xff]
    %v173 = vld [vmem:[%s6 + $0x28] sm:$0xff]
    %v174 = vld [vmem:[%s6 + $0x30] sm:$0xff]
    %v175 = vld [vmem:[%s6 + $0x38] sm:$0xff]
    %v176 = vld [vmem:[#allocation7 + $0x2] sm:$0x1]
    %v177 = vperm.slane %v176, 0
    %v179 = vsel %vm95, %v151, 0
    %v182 = vsel %vm95, %v152, 0
    %184 = vmatpush.msra.mxu0 0.0
    %185 = vmatpush.msra.mxu0 0.0
    %186 = vmatpush.msra.mxu0 0.0
    %187 = vmatpush.msra.mxu0 0.0
    %188 = vmatpush.msra.mxu0 0.0
    %189 = vmatpush.msra.mxu0 0.0
    %190 = vmatpush.msra.mxu0 0.0
    %191 = vmatpush.msra.mxu0 0.0
    %192 = vmatpush.msra.mxu0 0.0
    %193 = vmatpush.msra.mxu0 0.0
    %194 = vmatpush.msra.mxu0 0.0
    %195 = vmatpush.msra.mxu0 0.0
    %196 = vmatpush.msra.mxu0 %v159
    %197 = vmatpush.msra.mxu0 %v158
    %198 = vmatpush.msra.mxu0 %v157
    %199 = vmatpush.msra.mxu0 %v156
    %200 = vmatmul.f32.gmra.mxu0 %v179
    %v201 = vpop.f32.mrf.mxu0
    %v202 = vadd.f32 %v177, %v201
    %203 = vmatmul.f32.gmra.mxu0 %v182
    %v204 = vpop.f32.mrf.mxu0
    %v205 = vadd.f32 %v177, %v204
    %206 = vdwg.mxu0
    %v207 = vperm.slane %v153, 0
    %v208 = vperm.slane %v155, 0
    %212 = vrot.lane.b32.xlu0 %v202, 96
    %v213 = vpop.permute.xlu0 %212
    %vm214 = vcmask 130048
    %v215 = vsel %vm214, %v202, 0
    %v217 = vsel %vm214, %v213, 0
    %219 = vmatpush.xpose.msra.mxu0 0.0
    %220 = vmatpush.xpose.msra.mxu0 0.0
    %221 = vmatpush.xpose.msra.mxu0 0.0
    %222 = vmatpush.xpose.msra.mxu0 0.0
    %223 = vmatpush.xpose.msra.mxu0 0.0
    %224 = vmatpush.xpose.msra.mxu0 0.0
    %225 = vmatpush.xpose.msra.mxu0 0.0
    %226 = vmatpush.xpose.msra.mxu0 0.0
    %227 = vmatpush.xpose.msra.mxu0 0.0
    %228 = vmatpush.xpose.msra.mxu0 0.0
    %229 = vmatpush.xpose.msra.mxu0 0.0
    %230 = vmatpush.xpose.msra.mxu0 0.0
    %231 = vmatpush.xpose.msra.mxu0 0.0
    %232 = vmatpush.xpose.msra.mxu0 0.0
    %233 = vmatpush.xpose.msra.mxu0 0.0
    %234 = vmatpush.xpose.msra.mxu0 %v217
    %235 = vmatmul.f32.gmra.mxu0 %v215
    %v236 = vpop.f32.mrf.mxu0
    %v237 = vadd.f32 %v207, %v236
    %238 = vdwg.mxu0
    %240 = vrot.lane.b32.xlu0 %v205, 96
    %v241 = vpop.permute.xlu0 %240
    %v242 = vsel %vm214, %v205, 0
    %v244 = vsel %vm214, %v241, 0
    %246 = vmatpush.xpose.msra.mxu0 0.0
    %247 = vmatpush.xpose.msra.mxu0 0.0
    %248 = vmatpush.xpose.msra.mxu0 0.0
    %249 = vmatpush.xpose.msra.mxu0 0.0
    %250 = vmatpush.xpose.msra.mxu0 0.0
    %251 = vmatpush.xpose.msra.mxu0 0.0
    %252 = vmatpush.xpose.msra.mxu0 0.0
    %253 = vmatpush.xpose.msra.mxu0 0.0
    %254 = vmatpush.xpose.msra.mxu0 0.0
    %255 = vmatpush.xpose.msra.mxu0 0.0
    %256 = vmatpush.xpose.msra.mxu0 0.0
    %257 = vmatpush.xpose.msra.mxu0 0.0
    %258 = vmatpush.xpose.msra.mxu0 0.0
    %259 = vmatpush.xpose.msra.mxu0 0.0
    %260 = vmatpush.xpose.msra.mxu0 0.0
    %261 = vmatpush.xpose.msra.mxu0 %v244
    %262 = vmatmul.f32.gmra.mxu0 %v242
    %v263 = vpop.f32.mrf.mxu0
    %v264 = vadd.f32 %v208, %v263
    %265 = vdwg.mxu0
    %vm266 = vcmask 64512
    %v267 = vsel %vm266, %v237, -inf
    %268 = vmax.xlane.f32.xlu0 %v267
    %v269 = vpop.xlane.xlu0 %268
    %v270 = vsel %vm266, %v264, -inf
    %271 = vmax.xlane.f32.xlu0 %v270
    %v272 = vpop.xlane.xlu0 %271
    %v273 = vsub.f32 %v237, %v269
    %v274 = vsub.f32 %v264, %v272
    %v275 = vmul.f32 %v273, 1.442695
    %v276 = vpow.pop %v275
    %v277 = vmul.f32 %v274, 1.442695
    %v278 = vpow.pop %v277
    %v279 = vsel %vm266, %v276, 0.0
    %280 = vadd.xlane.f32.xlu0 %v279
    %v281 = vpop.xlane.xlu0 %280
    %v282 = vsel %vm266, %v278, 0.0
    %283 = vadd.xlane.f32.xlu0 %v282
    %v284 = vpop.xlane.xlu0 %283
    %v285 = vrcp.pop %v281
    %v286 = vrcp.pop %v284
    %v287 = vmul.f32 %v276, %v285
    %v288 = vmul.f32 %v278, %v286
    %289 = vrot.lane.b32.xlu0 %v202, 64
    %v290 = vpop.permute.xlu0 %289
    %v293 = vsel %vm266, %v287, 0
    %295 = vmatpush.msra.mxu0 0.0
    %296 = vmatpush.msra.mxu0 0.0
    %297 = vmatpush.msra.mxu0 0.0
    %298 = vmatpush.msra.mxu0 0.0
    %299 = vmatpush.msra.mxu0 0.0
    %300 = vmatpush.msra.mxu0 0.0
    %301 = vmatpush.msra.mxu0 0.0
    %302 = vmatpush.msra.mxu0 0.0
    %303 = vmatpush.msra.mxu0 0.0
    %304 = vmatpush.msra.mxu0 0.0
    %305 = vmatpush.msra.mxu0 0.0
    %306 = vmatpush.msra.mxu0 0.0
    %307 = vmatpush.msra.mxu0 0.0
    %308 = vmatpush.msra.mxu0 0.0
    %309 = vmatpush.msra.mxu0 0.0
    %310 = vmatpush.msra.mxu0 %v290
    %311 = vmatmul.f32.gmra.mxu0 %v293
    %v312 = vpop.f32.mrf.mxu0
    %v313 = vadd.f32 0.0, %v312
    %314 = vdwg.mxu0
    %315 = vrot.lane.b32.xlu0 %v205, 64
    %v316 = vpop.permute.xlu0 %315
    %v319 = vsel %vm266, %v288, 0
    %321 = vmatpush.msra.mxu0 0.0
    %322 = vmatpush.msra.mxu0 0.0
    %323 = vmatpush.msra.mxu0 0.0
    %324 = vmatpush.msra.mxu0 0.0
    %325 = vmatpush.msra.mxu0 0.0
    %326 = vmatpush.msra.mxu0 0.0
    %327 = vmatpush.msra.mxu0 0.0
    %328 = vmatpush.msra.mxu0 0.0
    %329 = vmatpush.msra.mxu0 0.0
    %330 = vmatpush.msra.mxu0 0.0
    %331 = vmatpush.msra.mxu0 0.0
    %332 = vmatpush.msra.mxu0 0.0
    %333 = vmatpush.msra.mxu0 0.0
    %334 = vmatpush.msra.mxu0 0.0
    %335 = vmatpush.msra.mxu0 0.0
    %336 = vmatpush.msra.mxu0 %v316
    %337 = vmatmul.f32.gmra.mxu0 %v319
    %v338 = vpop.f32.mrf.mxu0
    %v339 = vadd.f32 0.0, %v338
    %340 = vdwg.mxu0
    %341 = vrot.lane.b32.xlu0 %v202, 112
    %v342 = vpop.permute.xlu0 %341
    %343 = vrot.lane.b32.xlu0 %v202, 80
    %v344 = vpop.permute.xlu0 %343
    %v345 = vsel %vm214, %v342, 0
    %v347 = vsel %vm214, %v344, 0
    %349 = vmatpush.xpose.msra.mxu0 0.0
    %350 = vmatpush.xpose.msra.mxu0 0.0
    %351 = vmatpush.xpose.msra.mxu0 0.0
    %352 = vmatpush.xpose.msra.mxu0 0.0
    %353 = vmatpush.xpose.msra.mxu0 0.0
    %354 = vmatpush.xpose.msra.mxu0 0.0
    %355 = vmatpush.xpose.msra.mxu0 0.0
    %356 = vmatpush.xpose.msra.mxu0 0.0
    %357 = vmatpush.xpose.msra.mxu0 0.0
    %358 = vmatpush.xpose.msra.mxu0 0.0
    %359 = vmatpush.xpose.msra.mxu0 0.0
    %360 = vmatpush.xpose.msra.mxu0 0.0
    %361 = vmatpush.xpose.msra.mxu0 0.0
    %362 = vmatpush.xpose.msra.mxu0 0.0
    %363 = vmatpush.xpose.msra.mxu0 0.0
    %364 = vmatpush.xpose.msra.mxu0 %v347
    %365 = vmatmul.f32.gmra.mxu0 %v345
    %v366 = vpop.f32.mrf.mxu0
    %v367 = vadd.f32 %v207, %v366
    %368 = vdwg.mxu0
    %369 = vrot.lane.b32.xlu0 %v205, 112
    %v370 = vpop.permute.xlu0 %369
    %371 = vrot.lane.b32.xlu0 %v205, 80
    %v372 = vpop.permute.xlu0 %371
    %v373 = vsel %vm214, %v370, 0
    %v375 = vsel %vm214, %v372, 0
    %377 = vmatpush.xpose.msra.mxu0 0.0
    %378 = vmatpush.xpose.msra.mxu0 0.0
    %379 = vmatpush.xpose.msra.mxu0 0.0
    %380 = vmatpush.xpose.msra.mxu0 0.0
    %381 = vmatpush.xpose.msra.mxu0 0.0
    %382 = vmatpush.xpose.msra.mxu0 0.0
    %383 = vmatpush.xpose.msra.mxu0 0.0
    %384 = vmatpush.xpose.msra.mxu0 0.0
    %385 = vmatpush.xpose.msra.mxu0 0.0
    %386 = vmatpush.xpose.msra.mxu0 0.0
    %387 = vmatpush.xpose.msra.mxu0 0.0
    %388 = vmatpush.xpose.msra.mxu0 0.0
    %389 = vmatpush.xpose.msra.mxu0 0.0
    %390 = vmatpush.xpose.msra.mxu0 0.0
    %391 = vmatpush.xpose.msra.mxu0 0.0
    %392 = vmatpush.xpose.msra.mxu0 %v375
    %393 = vmatmul.f32.gmra.mxu0 %v373
    %v394 = vpop.f32.mrf.mxu0
    %v395 = vadd.f32 %v208, %v394
    %396 = vdwg.mxu0
    %v397 = vsel %vm266, %v367, -inf
    %398 = vmax.xlane.f32.xlu0 %v397
    %v399 = vpop.xlane.xlu0 %398
    %v400 = vsel %vm266, %v395, -inf
    %401 = vmax.xlane.f32.xlu0 %v400
    %v402 = vpop.xlane.xlu0 %401
    %v403 = vsub.f32 %v367, %v399
    %v404 = vsub.f32 %v395, %v402
    %v405 = vmul.f32 %v403, 1.442695
    %v406 = vpow.pop %v405
    %v407 = vmul.f32 %v404, 1.442695
    %v408 = vpow.pop %v407
    %v409 = vsel %vm266, %v406, 0.0
    %410 = vadd.xlane.f32.xlu0 %v409
    %v411 = vpop.xlane.xlu0 %410
    %v412 = vsel %vm266, %v408, 0.0
    %413 = vadd.xlane.f32.xlu0 %v412
    %v414 = vpop.xlane.xlu0 %413
    %v415 = vrcp.pop %v411
    %v416 = vrcp.pop %v414
    %v417 = vmul.f32 %v406, %v415
    %v418 = vmul.f32 %v408, %v416
    %419 = vrot.lane.b32.xlu0 %v202, 48
    %v420 = vpop.permute.xlu0 %419
    %v423 = vsel %vm266, %v417, 0
    %425 = vmatpush.msra.mxu0 0.0
    %426 = vmatpush.msra.mxu0 0.0
    %427 = vmatpush.msra.mxu0 0.0
    %428 = vmatpush.msra.mxu0 0.0
    %429 = vmatpush.msra.mxu0 0.0
    %430 = vmatpush.msra.mxu0 0.0
    %431 = vmatpush.msra.mxu0 0.0
    %432 = vmatpush.msra.mxu0 0.0
    %433 = vmatpush.msra.mxu0 0.0
    %434 = vmatpush.msra.mxu0 0.0
    %435 = vmatpush.msra.mxu0 0.0
    %436 = vmatpush.msra.mxu0 0.0
    %437 = vmatpush.msra.mxu0 0.0
    %438 = vmatpush.msra.mxu0 0.0
    %439 = vmatpush.msra.mxu0 0.0
    %440 = vmatpush.msra.mxu0 %v420
    %441 = vmatmul.f32.gmra.mxu0 %v423
    %v442 = vpop.f32.mrf.mxu0
    %v443 = vadd.f32 0.0, %v442
    %444 = vdwg.mxu0
    %445 = vrot.lane.b32.xlu0 %v205, 48
    %v446 = vpop.permute.xlu0 %445
    %v449 = vsel %vm266, %v418, 0
    %451 = vmatpush.msra.mxu0 0.0
    %452 = vmatpush.msra.mxu0 0.0
    %453 = vmatpush.msra.mxu0 0.0
    %454 = vmatpush.msra.mxu0 0.0
    %455 = vmatpush.msra.mxu0 0.0
    %456 = vmatpush.msra.mxu0 0.0
    %457 = vmatpush.msra.mxu0 0.0
    %458 = vmatpush.msra.mxu0 0.0
    %459 = vmatpush.msra.mxu0 0.0
    %460 = vmatpush.msra.mxu0 0.0
    %461 = vmatpush.msra.mxu0 0.0
    %462 = vmatpush.msra.mxu0 0.0
    %463 = vmatpush.msra.mxu0 0.0
    %464 = vmatpush.msra.mxu0 0.0
    %465 = vmatpush.msra.mxu0 0.0
    %466 = vmatpush.msra.mxu0 %v446
    %467 = vmatmul.f32.gmra.mxu0 %v449
    %v468 = vpop.f32.mrf.mxu0
    %v469 = vadd.f32 0.0, %v468
    %470 = vdwg.mxu0
    %473 = vrot.lane.b32.xlu0 %v443, 16
    %v474 = vpop.permute.xlu0 %473
    %475 = vrot.lane.b32.xlu0 %v469, 16
    %v476 = vpop.permute.xlu0 %475
    %v479 = vsel %vm214, %v313, %v474
    %v480 = vsel %vm214, %v339, %v476
    %v481 = vld [vmem:[#allocation7 + $0x3] sm:$0x1]
    %v482 = vperm.slane %v481, 0
    %v484 = vsel %vm95, %v479, 0
    %v487 = vsel %vm95, %v480, 0
    %489 = vmatpush.msra.mxu0 0.0
    %490 = vmatpush.msra.mxu0 0.0
    %491 = vmatpush.msra.mxu0 0.0
    %492 = vmatpush.msra.mxu0 0.0
    %493 = vmatpush.msra.mxu0 0.0
    %494 = vmatpush.msra.mxu0 0.0
    %495 = vmatpush.msra.mxu0 0.0
    %496 = vmatpush.msra.mxu0 0.0
    %497 = vmatpush.msra.mxu0 0.0
    %498 = vmatpush.msra.mxu0 0.0
    %499 = vmatpush.msra.mxu0 0.0
    %500 = vmatpush.msra.mxu0 0.0
    %501 = vmatpush.msra.mxu0 %v163
    %502 = vmatpush.msra.mxu0 %v162
    %503 = vmatpush.msra.mxu0 %v161
    %504 = vmatpush.msra.mxu0 %v160
    %505 = vmatmul.f32.gmra.mxu0 %v484
    %v506 = vpop.f32.mrf.mxu0
    %v507 = vadd.f32 %v482, %v506
    %508 = vmatmul.f32.gmra.mxu0 %v487
    %v509 = vpop.f32.mrf.mxu0
    %v510 = vadd.f32 %v482, %v509
    %511 = vdwg.mxu0
    %v512 = vadd.f32 %v507, %v151
    %v513 = vadd.f32 %v510, %v152
    %v514 = vld [vmem:[#allocation7 + $0x4] sm:$0x1]
    %v515 = vld [vmem:[#allocation7 + $0x5] sm:$0x1]
    %v516 = vsel %vm95, %v512, 0.0
    %517 = vadd.xlane.f32.xlu0 %v516
    %v518 = vpop.xlane.xlu0 %517
    %v519 = vsel %vm95, %v513, 0.0
    %520 = vadd.xlane.f32.xlu0 %v519
    %v521 = vpop.xlane.xlu0 %520
    %v522 = vmul.f32 %v518, %v108
    %v523 = vmul.f32 %v521, %v108
    %v524 = vsub.f32 %v512, %v522
    %v525 = vsub.f32 %v513, %v523
    %v526 = vmul.f32 %v524, %v524
    %v527 = vmul.f32 %v525, %v525
    %v528 = vsel %vm95, %v526, 0.0
    %529 = vadd.xlane.f32.xlu0 %v528
    %v530 = vpop.xlane.xlu0 %529
    %v531 = vsel %vm95, %v527, 0.0
    %532 = vadd.xlane.f32.xlu0 %v531
    %v533 = vpop.xlane.xlu0 %532
    %v534 = vmul.f32 %v530, %v108
    %v535 = vmul.f32 %v533, %v108
    %v536 = vadd.f32 %v534, 1e-12
    %v537 = vadd.f32 %v535, 1e-12
    %v538 = vrsqrt.pop %v536
    %v539 = vmul.f32 %v538, %v536
    %v540 = vmul.f32 %v539, %v538
    %v541 = vmul.f32 0.5, %v540
    %v542 = vsub.f32 1.5, %v541
    %v543 = vmul.f32 %v538, %v542
    %vm544 = vweird.f32 %v536
    %vm545 = vweird.f32 %v538
    %vm546 = vmor %vm544, %vm545
    %v547 = vsel %vm546, %v538, %v543
    %v548 = vrsqrt.pop %v537
    %v549 = vmul.f32 %v548, %v537
    %v550 = vmul.f32 %v549, %v548
    %v551 = vmul.f32 0.5, %v550
    %v552 = vsub.f32 1.5, %v551
    %v553 = vmul.f32 %v548, %v552
    %vm554 = vweird.f32 %v537
    %vm555 = vweird.f32 %v548
    %vm556 = vmor %vm554, %vm555
    %v557 = vsel %vm556, %v548, %v553
    %v558 = vmul.f32 %v524, %v547
    %v559 = vmul.f32 %v525, %v557
    %v560 = vperm.slane %v514, 0
    %v561 = vmul.f32 %v558, %v560
    %v562 = vmul.f32 %v559, %v560
    %v563 = vperm.slane %v515, 0
    %v564 = vadd.f32 %v561, %v563
    %v565 = vadd.f32 %v562, %v563
    %v566 = vld [vmem:[#allocation7 + $0x6] sm:$0x1]
    %v567 = vperm.slane %v566, 0
    %v569 = vsel %vm95, %v564, 0
    %v572 = vsel %vm95, %v565, 0
    %574 = vmatpush.msra.mxu0 0.0
    %575 = vmatpush.msra.mxu0 0.0
    %576 = vmatpush.msra.mxu0 0.0
    %577 = vmatpush.msra.mxu0 0.0
    %578 = vmatpush.msra.mxu0 0.0
    %579 = vmatpush.msra.mxu0 0.0
    %580 = vmatpush.msra.mxu0 0.0
    %581 = vmatpush.msra.mxu0 0.0
    %582 = vmatpush.msra.mxu0 0.0
    %583 = vmatpush.msra.mxu0 0.0
    %584 = vmatpush.msra.mxu0 0.0
    %585 = vmatpush.msra.mxu0 0.0
    %586 = vmatpush.msra.mxu0 %v167
    %587 = vmatpush.msra.mxu0 %v166
    %588 = vmatpush.msra.mxu0 %v165
    %589 = vmatpush.msra.mxu0 %v164
    %590 = vmatmul.f32.gmra.mxu0 %v569
    %v591 = vpop.f32.mrf.mxu0
    %v592 = vadd.f32 %v567, %v591
    %593 = vmatmul.f32.gmra.mxu0 %v572
    %v594 = vpop.f32.mrf.mxu0
    %v595 = vadd.f32 %v567, %v594
    %596 = vdwg.mxu0
    %v597 = vmul.f32 %v592, %v592
    %v598 = vmul.f32 %v595, %v595
    %v599 = vmul.f32 %v592, %v597
    %v600 = vmul.f32 %v595, %v598
    %v601 = vmul.f32 %v599, 0.044715
    %v602 = vmul.f32 %v600, 0.044715
    %v603 = vadd.f32 %v592, %v601
    %v604 = vadd.f32 %v595, %v602
    %v605 = vmul.f32 %v603, 0.7978846
    %v606 = vmul.f32 %v604, 0.7978846
    %v607 = vtanh.pop %v605
    %v608 = vtanh.pop %v606
    %v609 = vadd.f32 %v607, 1.0
    %v610 = vadd.f32 %v608, 1.0
    %v611 = vmul.f32 %v609, 0.5
    %v612 = vmul.f32 %v610, 0.5
    %v613 = vmul.f32 %v592, %v611
    %v614 = vmul.f32 %v595, %v612
    %v615 = vld [vmem:[#allocation7 + $0x7] sm:$0x1]
    %v616 = vperm.slane %v615, 0
    %vm617 = vcmask 523264
    %v619 = vsel %vm617, %v613, 0
    %v622 = vsel %vm617, %v614, 0
    %624 = vmatpush.msra.mxu0 0.0
    %625 = vmatpush.msra.mxu0 0.0
    %626 = vmatpush.msra.mxu0 0.0
    %627 = vmatpush.msra.mxu0 0.0
    %628 = vmatpush.msra.mxu0 0.0
    %629 = vmatpush.msra.mxu0 0.0
    %630 = vmatpush.msra.mxu0 0.0
    %631 = vmatpush.msra.mxu0 0.0
    %632 = vmatpush.msra.mxu0 %v175
    %633 = vmatpush.msra.mxu0 %v174
    %634 = vmatpush.msra.mxu0 %v173
    %635 = vmatpush.msra.mxu0 %v172
    %636 = vmatpush.msra.mxu0 %v171
    %637 = vmatpush.msra.mxu0 %v170
    %638 = vmatpush.msra.mxu0 %v169
    %639 = vmatpush.msra.mxu0 %v168
    %640 = vmatmul.f32.gmra.mxu0 %v619
    %v641 = vpop.f32.mrf.mxu0
    %v642 = vadd.f32 %v616, %v641
    %643 = vmatmul.f32.gmra.mxu0 %v622
    %v644 = vpop.f32.mrf.mxu0
    %v645 = vadd.f32 %v616, %v644
    %646 = vdwg.mxu0
    %v647 = vadd.f32 %v642, %v564
    %v648 = vadd.f32 %v645, %v565
    %v649 = vld [vmem:[#allocation7 + $0x8] sm:$0x1]
    %v650 = vld [vmem:[#allocation7 + $0x9] sm:$0x1]
    %v651 = vsel %vm95, %v647, 0.0
    %652 = vadd.xlane.f32.xlu0 %v651
    %v653 = vpop.xlane.xlu0 %652
    %v654 = vsel %vm95, %v648, 0.0
    %655 = vadd.xlane.f32.xlu0 %v654
    %v656 = vpop.xlane.xlu0 %655
    %v657 = vmul.f32 %v653, %v108
    %v658 = vmul.f32 %v656, %v108
    %v659 = vsub.f32 %v647, %v657
    %v660 = vsub.f32 %v648, %v658
    %v661 = vmul.f32 %v659, %v659
    %v662 = vmul.f32 %v660, %v660
    %v663 = vsel %vm95, %v661, 0.0
    %664 = vadd.xlane.f32.xlu0 %v663
    %v665 = vpop.xlane.xlu0 %664
    %v666 = vsel %vm95, %v662, 0.0
    %667 = vadd.xlane.f32.xlu0 %v666
    %v668 = vpop.xlane.xlu0 %667
    %v669 = vmul.f32 %v665, %v108
    %v670 = vmul.f32 %v668, %v108
    %v671 = vadd.f32 %v669, 1e-12
    %v672 = vadd.f32 %v670, 1e-12
    %v673 = vrsqrt.pop %v671
    %v674 = vmul.f32 %v673, %v671
    %v675 = vmul.f32 %v674, %v673
    %v676 = vmul.f32 0.5, %v675
    %v677 = vsub.f32 1.5, %v676
    %v678 = vmul.f32 %v673, %v677
    %vm679 = vweird.f32 %v671
    %vm680 = vweird.f32 %v673
    %vm681 = vmor %vm679, %vm680
    %v682 = vsel %vm681, %v673, %v678
    %v683 = vrsqrt.pop %v672
    %v684 = vmul.f32 %v683, %v672
    %v685 = vmul.f32 %v684, %v683
    %v686 = vmul.f32 0.5, %v685
    %v687 = vsub.f32 1.5, %v686
    %v688 = vmul.f32 %v683, %v687
    %vm689 = vweird.f32 %v672
    %vm690 = vweird.f32 %v683
    %vm691 = vmor %vm689, %vm690
    %v692 = vsel %vm691, %v683, %v688
    %v693 = vmul.f32 %v659, %v682
    %v694 = vmul.f32 %v660, %v692
    %v695 = vperm.slane %v649, 0
    %v696 = vmul.f32 %v693, %v695
    %v697 = vmul.f32 %v694, %v695
    %v698 = vperm.slane %v650, 0
    %v699 = vadd.f32 %v696, %v698
    %v700 = vadd.f32 %v697, %v698
    %s701 = scalar_lea.vmem %s3, 32
    %v702 = vld [vmem:[%s701] sm:$0xff]
    %v703 = vld [vmem:[%s701 + $0x8] sm:$0xff]
    %v704 = vld [vmem:[%s701 + $0x10] sm:$0xff]
    %v705 = vld [vmem:[%s701 + $0x18] sm:$0xff]
    %s706 = scalar_lea.vmem %s4, 32
    %v707 = vld [vmem:[%s706] sm:$0xff]
    %v708 = vld [vmem:[%s706 + $0x8] sm:$0xff]
    %v709 = vld [vmem:[%s706 + $0x10] sm:$0xff]
    %v710 = vld [vmem:[%s706 + $0x18] sm:$0xff]
    %s711 = scalar_lea.vmem %s5, 32
    %v712 = vld [vmem:[%s711] sm:$0xff]
    %v713 = vld [vmem:[%s711 + $0x8] sm:$0xff]
    %v714 = vld [vmem:[%s711 + $0x10] sm:$0xff]
    %v715 = vld [vmem:[%s711 + $0x18] sm:$0xff]
    %s716 = scalar_lea.vmem %s6, 64
    %v717 = vld [vmem:[%s716] sm:$0xff]
    %v718 = vld [vmem:[%s716 + $0x8] sm:$0xff]
    %v719 = vld [vmem:[%s716 + $0x10] sm:$0xff]
    %v720 = vld [vmem:[%s716 + $0x18] sm:$0xff]
    %v721 = vld [vmem:[%s716 + $0x20] sm:$0xff]
    %v722 = vld [vmem:[%s716 + $0x28] sm:$0xff]
    %v723 = vld [vmem:[%s716 + $0x30] sm:$0xff]
    %v724 = vld [vmem:[%s716 + $0x38] sm:$0xff]
    %v725 = vld [vmem:[#allocation7 + $0xa] sm:$0x1]
    %v726 = vperm.slane %v725, 0
    %v728 = vsel %vm95, %v699, 0
    %v731 = vsel %vm95, %v700, 0
    %733 = vmatpush.msra.mxu0 0.0
    %734 = vmatpush.msra.mxu0 0.0
    %735 = vmatpush.msra.mxu0 0.0
    %736 = vmatpush.msra.mxu0 0.0
    %737 = vmatpush.msra.mxu0 0.0
    %738 = vmatpush.msra.mxu0 0.0
    %739 = vmatpush.msra.mxu0 0.0
    %740 = vmatpush.msra.mxu0 0.0
    %741 = vmatpush.msra.mxu0 0.0
    %742 = vmatpush.msra.mxu0 0.0
    %743 = vmatpush.msra.mxu0 0.0
    %744 = vmatpush.msra.mxu0 0.0
    %745 = vmatpush.msra.mxu0 %v705
    %746 = vmatpush.msra.mxu0 %v704
    %747 = vmatpush.msra.mxu0 %v703
    %748 = vmatpush.msra.mxu0 %v702
    %749 = vmatmul.f32.gmra.mxu0 %v728
    %v750 = vpop.f32.mrf.mxu0
    %v751 = vadd.f32 %v726, %v750
    %752 = vmatmul.f32.gmra.mxu0 %v731
    %v753 = vpop.f32.mrf.mxu0
    %v754 = vadd.f32 %v726, %v753
    %755 = vdwg.mxu0
    %757 = vrot.lane.b32.xlu0 %v751, 96
    %v758 = vpop.permute.xlu0 %757
    %v759 = vsel %vm214, %v751, 0
    %v761 = vsel %vm214, %v758, 0
    %763 = vmatpush.xpose.msra.mxu0 0.0
    %764 = vmatpush.xpose.msra.mxu0 0.0
    %765 = vmatpush.xpose.msra.mxu0 0.0
    %766 = vmatpush.xpose.msra.mxu0 0.0
    %767 = vmatpush.xpose.msra.mxu0 0.0
    %768 = vmatpush.xpose.msra.mxu0 0.0
    %769 = vmatpush.xpose.msra.mxu0 0.0
    %770 = vmatpush.xpose.msra.mxu0 0.0
    %771 = vmatpush.xpose.msra.mxu0 0.0
    %772 = vmatpush.xpose.msra.mxu0 0.0
    %773 = vmatpush.xpose.msra.mxu0 0.0
    %774 = vmatpush.xpose.msra.mxu0 0.0
    %775 = vmatpush.xpose.msra.mxu0 0.0
    %776 = vmatpush.xpose.msra.mxu0 0.0
    %777 = vmatpush.xpose.msra.mxu0 0.0
    %778 = vmatpush.xpose.msra.mxu0 %v761
    %779 = vmatmul.f32.gmra.mxu0 %v759
    %v780 = vpop.f32.mrf.mxu0
    %v781 = vadd.f32 %v207, %v780
    %782 = vdwg.mxu0
    %784 = vrot.lane.b32.xlu0 %v754, 96
    %v785 = vpop.permute.xlu0 %784
    %v786 = vsel %vm214, %v754, 0
    %v788 = vsel %vm214, %v785, 0
    %790 = vmatpush.xpose.msra.mxu0 0.0
    %791 = vmatpush.xpose.msra.mxu0 0.0
    %792 = vmatpush.xpose.msra.mxu0 0.0
    %793 = vmatpush.xpose.msra.mxu0 0.0
    %794 = vmatpush.xpose.msra.mxu0 0.0
    %795 = vmatpush.xpose.msra.mxu0 0.0
    %796 = vmatpush.xpose.msra.mxu0 0.0
    %797 = vmatpush.xpose.msra.mxu0 0.0
    %798 = vmatpush.xpose.msra.mxu0 0.0
    %799 = vmatpush.xpose.msra.mxu0 0.0
    %800 = vmatpush.xpose.msra.mxu0 0.0
    %801 = vmatpush.xpose.msra.mxu0 0.0
    %802 = vmatpush.xpose.msra.mxu0 0.0
    %803 = vmatpush.xpose.msra.mxu0 0.0
    %804 = vmatpush.xpose.msra.mxu0 0.0
    %805 = vmatpush.xpose.msra.mxu0 %v788
    %806 = vmatmul.f32.gmra.mxu0 %v786
    %v807 = vpop.f32.mrf.mxu0
    %v808 = vadd.f32 %v208, %v807
    %809 = vdwg.mxu0
    %v810 = vsel %vm266, %v781, -inf
    %811 = vmax.xlane.f32.xlu0 %v810
    %v812 = vpop.xlane.xlu0 %811
    %v813 = vsel %vm266, %v808, -inf
    %814 = vmax.xlane.f32.xlu0 %v813
    %v815 = vpop.xlane.xlu0 %814
    %v816 = vsub.f32 %v781, %v812
    %v817 = vsub.f32 %v808, %v815
    %v818 = vmul.f32 %v816, 1.442695
    %v819 = vpow.pop %v818
    %v820 = vmul.f32 %v817, 1.442695
    %v821 = vpow.pop %v820
    %v822 = vsel %vm266, %v819, 0.0
    %823 = vadd.xlane.f32.xlu0 %v822
    %v824 = vpop.xlane.xlu0 %823
    %v825 = vsel %vm266, %v821, 0.0
    %826 = vadd.xlane.f32.xlu0 %v825
    %v827 = vpop.xlane.xlu0 %826
    %v828 = vrcp.pop %v824
    %v829 = vrcp.pop %v827
    %v830 = vmul.f32 %v819, %v828
    %v831 = vmul.f32 %v821, %v829
    %832 = vrot.lane.b32.xlu0 %v751, 64
    %v833 = vpop.permute.xlu0 %832
    %v836 = vsel %vm266, %v830, 0
    %838 = vmatpush.msra.mxu0 0.0
    %839 = vmatpush.msra.mxu0 0.0
    %840 = vmatpush.msra.mxu0 0.0
    %841 = vmatpush.msra.mxu0 0.0
    %842 = vmatpush.msra.mxu0 0.0
    %843 = vmatpush.msra.mxu0 0.0
    %844 = vmatpush.msra.mxu0 0.0
    %845 = vmatpush.msra.mxu0 0.0
    %846 = vmatpush.msra.mxu0 0.0
    %847 = vmatpush.msra.mxu0 0.0
    %848 = vmatpush.msra.mxu0 0.0
    %849 = vmatpush.msra.mxu0 0.0
    %850 = vmatpush.msra.mxu0 0.0
    %851 = vmatpush.msra.mxu0 0.0
    %852 = vmatpush.msra.mxu0 0.0
    %853 = vmatpush.msra.mxu0 %v833
    %854 = vmatmul.f32.gmra.mxu0 %v836
    %v855 = vpop.f32.mrf.mxu0
    %v856 = vadd.f32 0.0, %v855
    %857 = vdwg.mxu0
    %858 = vrot.lane.b32.xlu0 %v754, 64
    %v859 = vpop.permute.xlu0 %858
    %v862 = vsel %vm266, %v831, 0
    %864 = vmatpush.msra.mxu0 0.0
    %865 = vmatpush.msra.mxu0 0.0
    %866 = vmatpush.msra.mxu0 0.0
    %867 = vmatpush.msra.mxu0 0.0
    %868 = vmatpush.msra.mxu0 0.0
    %869 = vmatpush.msra.mxu0 0.0
    %870 = vmatpush.msra.mxu0 0.0
    %871 = vmatpush.msra.mxu0 0.0
    %872 = vmatpush.msra.mxu0 0.0
    %873 = vmatpush.msra.mxu0 0.0
    %874 = vmatpush.msra.mxu0 0.0
    %875 = vmatpush.msra.mxu0 0.0
    %876 = vmatpush.msra.mxu0 0.0
    %877 = vmatpush.msra.mxu0 0.0
    %878 = vmatpush.msra.mxu0 0.0
    %879 = vmatpush.msra.mxu0 %v859
    %880 = vmatmul.f32.gmra.mxu0 %v862
    %v881 = vpop.f32.mrf.mxu0
    %v882 = vadd.f32 0.0, %v881
    %883 = vdwg.mxu0
    %884 = vrot.lane.b32.xlu0 %v751, 112
    %v885 = vpop.permute.xlu0 %884
    %886 = vrot.lane.b32.xlu0 %v751, 80
    %v887 = vpop.permute.xlu0 %886
    %v888 = vsel %vm214, %v885, 0
    %v890 = vsel %vm214, %v887, 0
    %892 = vmatpush.xpose.msra.mxu0 0.0
    %893 = vmatpush.xpose.msra.mxu0 0.0
    %894 = vmatpush.xpose.msra.mxu0 0.0
    %895 = vmatpush.xpose.msra.mxu0 0.0
    %896 = vmatpush.xpose.msra.mxu0 0.0
    %897 = vmatpush.xpose.msra.mxu0 0.0
    %898 = vmatpush.xpose.msra.mxu0 0.0
    %899 = vmatpush.xpose.msra.mxu0 0.0
    %900 = vmatpush.xpose.msra.mxu0 0.0
    %901 = vmatpush.xpose.msra.mxu0 0.0
    %902 = vmatpush.xpose.msra.mxu0 0.0
    %903 = vmatpush.xpose.msra.mxu0 0.0
    %904 = vmatpush.xpose.msra.mxu0 0.0
    %905 = vmatpush.xpose.msra.mxu0 0.0
    %906 = vmatpush.xpose.msra.mxu0 0.0
    %907 = vmatpush.xpose.msra.mxu0 %v890
    %908 = vmatmul.f32.gmra.mxu0 %v888
    %v909 = vpop.f32.mrf.mxu0
    %v910 = vadd.f32 %v207, %v909
    %911 = vdwg.mxu0
    %912 = vrot.lane.b32.xlu0 %v754, 112
    %v913 = vpop.permute.xlu0 %912
    %914 = vrot.lane.b32.xlu0 %v754, 80
    %v915 = vpop.permute.xlu0 %914
    %v916 = vsel %vm214, %v913, 0
    %v918 = vsel %vm214, %v915, 0
    %920 = vmatpush.xpose.msra.mxu0 0.0
    %921 = vmatpush.xpose.msra.mxu0 0.0
    %922 = vmatpush.xpose.msra.mxu0 0.0
    %923 = vmatpush.xpose.msra.mxu0 0.0
    %924 = vmatpush.xpose.msra.mxu0 0.0
    %925 = vmatpush.xpose.msra.mxu0 0.0
    %926 = vmatpush.xpose.msra.mxu0 0.0
    %927 = vmatpush.xpose.msra.mxu0 0.0
    %928 = vmatpush.xpose.msra.mxu0 0.0
    %929 = vmatpush.xpose.msra.mxu0 0.0
    %930 = vmatpush.xpose.msra.mxu0 0.0
    %931 = vmatpush.xpose.msra.mxu0 0.0
    %932 = vmatpush.xpose.msra.mxu0 0.0
    %933 = vmatpush.xpose.msra.mxu0 0.0
    %934 = vmatpush.xpose.msra.mxu0 0.0
    %935 = vmatpush.xpose.msra.mxu0 %v918
    %936 = vmatmul.f32.gmra.mxu0 %v916
    %v937 = vpop.f32.mrf.mxu0
    %v938 = vadd.f32 %v208, %v937
    %939 = vdwg.mxu0
    %v940 = vsel %vm266, %v910, -inf
    %941 = vmax.xlane.f32.xlu0 %v940
    %v942 = vpop.xlane.xlu0 %941
    %v943 = vsel %vm266, %v938, -inf
    %944 = vmax.xlane.f32.xlu0 %v943
    %v945 = vpop.xlane.xlu0 %944
    %v946 = vsub.f32 %v910, %v942
    %v947 = vsub.f32 %v938, %v945
    %v948 = vmul.f32 %v946, 1.442695
    %v949 = vpow.pop %v948
    %v950 = vmul.f32 %v947, 1.442695
    %v951 = vpow.pop %v950
    %v952 = vsel %vm266, %v949, 0.0
    %953 = vadd.xlane.f32.xlu0 %v952
    %v954 = vpop.xlane.xlu0 %953
    %v955 = vsel %vm266, %v951, 0.0
    %956 = vadd.xlane.f32.xlu0 %v955
    %v957 = vpop.xlane.xlu0 %956
    %v958 = vrcp.pop %v954
    %v959 = vrcp.pop %v957
    %v960 = vmul.f32 %v949, %v958
    %v961 = vmul.f32 %v951, %v959
    %962 = vrot.lane.b32.xlu0 %v751, 48
    %v963 = vpop.permute.xlu0 %962
    %v966 = vsel %vm266, %v960, 0
    %968 = vmatpush.msra.mxu0 0.0
    %969 = vmatpush.msra.mxu0 0.0
    %970 = vmatpush.msra.mxu0 0.0
    %971 = vmatpush.msra.mxu0 0.0
    %972 = vmatpush.msra.mxu0 0.0
    %973 = vmatpush.msra.mxu0 0.0
    %974 = vmatpush.msra.mxu0 0.0
    %975 = vmatpush.msra.mxu0 0.0
    %976 = vmatpush.msra.mxu0 0.0
    %977 = vmatpush.msra.mxu0 0.0
    %978 = vmatpush.msra.mxu0 0.0
    %979 = vmatpush.msra.mxu0 0.0
    %980 = vmatpush.msra.mxu0 0.0
    %981 = vmatpush.msra.mxu0 0.0
    %982 = vmatpush.msra.mxu0 0.0
    %983 = vmatpush.msra.mxu0 %v963
    %984 = vmatmul.f32.gmra.mxu0 %v966
    %v985 = vpop.f32.mrf.mxu0
    %v986 = vadd.f32 0.0, %v985
    %987 = vdwg.mxu0
    %988 = vrot.lane.b32.xlu0 %v754, 48
    %v989 = vpop.permute.xlu0 %988
    %v992 = vsel %vm266, %v961, 0
    %994 = vmatpush.msra.mxu0 0.0
    %995 = vmatpush.msra.mxu0 0.0
    %996 = vmatpush.msra.mxu0 0.0
    %997 = vmatpush.msra.mxu0 0.0
    %998 = vmatpush.msra.mxu0 0.0
    %999 = vmatpush.msra.mxu0 0.0
    %1000 = vmatpush.msra.mxu0 0.0
    %1001 = vmatpush.msra.mxu0 0.0
    %1002 = vmatpush.msra.mxu0 0.0
    %1003 = vmatpush.msra.mxu0 0.0
    %1004 = vmatpush.msra.mxu0 0.0
    %1005 = vmatpush.msra.mxu0 0.0
    %1006 = vmatpush.msra.mxu0 0.0
    %1007 = vmatpush.msra.mxu0 0.0
    %1008 = vmatpush.msra.mxu0 0.0
    %1009 = vmatpush.msra.mxu0 %v989
    %1010 = vmatmul.f32.gmra.mxu0 %v992
    %v1011 = vpop.f32.mrf.mxu0
    %v1012 = vadd.f32 0.0, %v1011
    %1013 = vdwg.mxu0
    %1016 = vrot.lane.b32.xlu0 %v986, 16
    %v1017 = vpop.permute.xlu0 %1016
    %1018 = vrot.lane.b32.xlu0 %v1012, 16
    %v1019 = vpop.permute.xlu0 %1018
    %v1022 = vsel %vm214, %v856, %v1017
    %v1023 = vsel %vm214, %v882, %v1019
    %v1024 = vld [vmem:[#allocation7 + $0xb] sm:$0x1]
    %v1025 = vperm.slane %v1024, 0
    %v1027 = vsel %vm95, %v1022, 0
    %v1030 = vsel %vm95, %v1023, 0
    %1032 = vmatpush.msra.mxu0 0.0
    %1033 = vmatpush.msra.mxu0 0.0
    %1034 = vmatpush.msra.mxu0 0.0
    %1035 = vmatpush.msra.mxu0 0.0
    %1036 = vmatpush.msra.mxu0 0.0
    %1037 = vmatpush.msra.mxu0 0.0
    %1038 = vmatpush.msra.mxu0 0.0
    %1039 = vmatpush.msra.mxu0 0.0
    %1040 = vmatpush.msra.mxu0 0.0
    %1041 = vmatpush.msra.mxu0 0.0
    %1042 = vmatpush.msra.mxu0 0.0
    %1043 = vmatpush.msra.mxu0 0.0
    %1044 = vmatpush.msra.mxu0 %v710
    %1045 = vmatpush.msra.mxu0 %v709
    %1046 = vmatpush.msra.mxu0 %v708
    %1047 = vmatpush.msra.mxu0 %v707
    %1048 = vmatmul.f32.gmra.mxu0 %v1027
    %v1049 = vpop.f32.mrf.mxu0
    %v1050 = vadd.f32 %v1025, %v1049
    %1051 = vmatmul.f32.gmra.mxu0 %v1030
    %v1052 = vpop.f32.mrf.mxu0
    %v1053 = vadd.f32 %v1025, %v1052
    %1054 = vdwg.mxu0
    %v1055 = vadd.f32 %v1050, %v699
    %v1056 = vadd.f32 %v1053, %v700
    %v1057 = vld [vmem:[#allocation7 + $0xc] sm:$0x1]
    %v1058 = vld [vmem:[#allocation7 + $0xd] sm:$0x1]
    %v1059 = vsel %vm95, %v1055, 0.0
    %1060 = vadd.xlane.f32.xlu0 %v1059
    %v1061 = vpop.xlane.xlu0 %1060
    %v1062 = vsel %vm95, %v1056, 0.0
    %1063 = vadd.xlane.f32.xlu0 %v1062
    %v1064 = vpop.xlane.xlu0 %1063
    %v1065 = vmul.f32 %v1061, %v108
    %v1066 = vmul.f32 %v1064, %v108
    %v1067 = vsub.f32 %v1055, %v1065
    %v1068 = vsub.f32 %v1056, %v1066
    %v1069 = vmul.f32 %v1067, %v1067
    %v1070 = vmul.f32 %v1068, %v1068
    %v1071 = vsel %vm95, %v1069, 0.0
    %1072 = vadd.xlane.f32.xlu0 %v1071
    %v1073 = vpop.xlane.xlu0 %1072
    %v1074 = vsel %vm95, %v1070, 0.0
    %1075 = vadd.xlane.f32.xlu0 %v1074
    %v1076 = vpop.xlane.xlu0 %1075
    %v1077 = vmul.f32 %v1073, %v108
    %v1078 = vmul.f32 %v1076, %v108
    %v1079 = vadd.f32 %v1077, 1e-12
    %v1080 = vadd.f32 %v1078, 1e-12
    %v1081 = vrsqrt.pop %v1079
    %v1082 = vmul.f32 %v1081, %v1079
    %v1083 = vmul.f32 %v1082, %v1081
    %v1084 = vmul.f32 0.5, %v1083
    %v1085 = vsub.f32 1.5, %v1084
    %v1086 = vmul.f32 %v1081, %v1085
    %vm1087 = vweird.f32 %v1079
    %vm1088 = vweird.f32 %v1081
    %vm1089 = vmor %vm1087, %vm1088
    %v1090 = vsel %vm1089, %v1081, %v1086
    %v1091 = vrsqrt.pop %v1080
    %v1092 = vmul.f32 %v1091, %v1080
    %v1093 = vmul.f32 %v1092, %v1091
    %v1094 = vmul.f32 0.5, %v1093
    %v1095 = vsub.f32 1.5, %v1094
    %v1096 = vmul.f32 %v1091, %v1095
    %vm1097 = vweird.f32 %v1080
    %vm1098 = vweird.f32 %v1091
    %vm1099 = vmor %vm1097, %vm1098
    %v1100 = vsel %vm1099, %v1091, %v1096
    %v1101 = vmul.f32 %v1067, %v1090
    %v1102 = vmul.f32 %v1068, %v1100
    %v1103 = vperm.slane %v1057, 0
    %v1104 = vmul.f32 %v1101, %v1103
    %v1105 = vmul.f32 %v1102, %v1103
    %v1106 = vperm.slane %v1058, 0
    %v1107 = vadd.f32 %v1104, %v1106
    %v1108 = vadd.f32 %v1105, %v1106
    %v1109 = vld [vmem:[#allocation7 + $0xe] sm:$0x1]
    %v1110 = vperm.slane %v1109, 0
    %v1112 = vsel %vm95, %v1107, 0
    %v1115 = vsel %vm95, %v1108, 0
    %1117 = vmatpush.msra.mxu0 0.0
    %1118 = vmatpush.msra.mxu0 0.0
    %1119 = vmatpush.msra.mxu0 0.0
    %1120 = vmatpush.msra.mxu0 0.0
    %1121 = vmatpush.msra.mxu0 0.0
    %1122 = vmatpush.msra.mxu0 0.0
    %1123 = vmatpush.msra.mxu0 0.0
    %1124 = vmatpush.msra.mxu0 0.0
    %1125 = vmatpush.msra.mxu0 0.0
    %1126 = vmatpush.msra.mxu0 0.0
    %1127 = vmatpush.msra.mxu0 0.0
    %1128 = vmatpush.msra.mxu0 0.0
    %1129 = vmatpush.msra.mxu0 %v715
    %1130 = vmatpush.msra.mxu0 %v714
    %1131 = vmatpush.msra.mxu0 %v713
    %1132 = vmatpush.msra.mxu0 %v712
    %1133 = vmatmul.f32.gmra.mxu0 %v1112
    %v1134 = vpop.f32.mrf.mxu0
    %v1135 = vadd.f32 %v1110, %v1134
    %1136 = vmatmul.f32.gmra.mxu0 %v1115
    %v1137 = vpop.f32.mrf.mxu0
    %v1138 = vadd.f32 %v1110, %v1137
    %1139 = vdwg.mxu0
    %v1140 = vmul.f32 %v1135, %v1135
    %v1141 = vmul.f32 %v1138, %v1138
    %v1142 = vmul.f32 %v1135, %v1140
    %v1143 = vmul.f32 %v1138, %v1141
    %v1144 = vmul.f32 %v1142, 0.044715
    %v1145 = vmul.f32 %v1143, 0.044715
    %v1146 = vadd.f32 %v1135, %v1144
    %v1147 = vadd.f32 %v1138, %v1145
    %v1148 = vmul.f32 %v1146, 0.7978846
    %v1149 = vmul.f32 %v1147, 0.7978846
    %v1150 = vtanh.pop %v1148
    %v1151 = vtanh.pop %v1149
    %v1152 = vadd.f32 %v1150, 1.0
    %v1153 = vadd.f32 %v1151, 1.0
    %v1154 = vmul.f32 %v1152, 0.5
    %v1155 = vmul.f32 %v1153, 0.5
    %v1156 = vmul.f32 %v1135, %v1154
    %v1157 = vmul.f32 %v1138, %v1155
    %v1158 = vld [vmem:[#allocation7 + $0xf] sm:$0x1]
    %v1159 = vperm.slane %v1158, 0
    %v1161 = vsel %vm617, %v1156, 0
    %v1164 = vsel %vm617, %v1157, 0
    %1166 = vmatpush.msra.mxu0 0.0
    %1167 = vmatpush.msra.mxu0 0.0
    %1168 = vmatpush.msra.mxu0 0.0
    %1169 = vmatpush.msra.mxu0 0.0
    %1170 = vmatpush.msra.mxu0 0.0
    %1171 = vmatpush.msra.mxu0 0.0
    %1172 = vmatpush.msra.mxu0 0.0
    %1173 = vmatpush.msra.mxu0 0.0
    %1174 = vmatpush.msra.mxu0 %v724
    %1175 = vmatpush.msra.mxu0 %v723
    %1176 = vmatpush.msra.mxu0 %v722
    %1177 = vmatpush.msra.mxu0 %v721
    %1178 = vmatpush.msra.mxu0 %v720
    %1179 = vmatpush.msra.mxu0 %v719
    %1180 = vmatpush.msra.mxu0 %v718
    %1181 = vmatpush.msra.mxu0 %v717
    %1182 = vmatmul.f32.gmra.mxu0 %v1161
    %v1183 = vpop.f32.mrf.mxu0
    %v1184 = vadd.f32 %v1159, %v1183
    %1185 = vmatmul.f32.gmra.mxu0 %v1164
    %v1186 = vpop.f32.mrf.mxu0
    %v1187 = vadd.f32 %v1159, %v1186
    %1188 = vdwg.mxu0
    %v1189 = vadd.f32 %v1184, %v1107
    %v1190 = vadd.f32 %v1187, %v1108
    %v1191 = vld [vmem:[#allocation7 + $0x10] sm:$0x1]
    %v1192 = vld [vmem:[#allocation7 + $0x11] sm:$0x1]
    %v1193 = vsel %vm95, %v1189, 0.0
    %1194 = vadd.xlane.f32.xlu0 %v1193
    %v1195 = vpop.xlane.xlu0 %1194
    %v1196 = vsel %vm95, %v1190, 0.0
    %1197 = vadd.xlane.f32.xlu0 %v1196
    %v1198 = vpop.xlane.xlu0 %1197
    %v1199 = vmul.f32 %v1195, %v108
    %v1200 = vmul.f32 %v1198, %v108
    %v1201 = vsub.f32 %v1189, %v1199
    %v1202 = vsub.f32 %v1190, %v1200
    %v1203 = vmul.f32 %v1201, %v1201
    %v1204 = vmul.f32 %v1202, %v1202
    %v1205 = vsel %vm95, %v1203, 0.0
    %1206 = vadd.xlane.f32.xlu0 %v1205
    %v1207 = vpop.xlane.xlu0 %1206
    %v1208 = vsel %vm95, %v1204, 0.0
    %1209 = vadd.xlane.f32.xlu0 %v1208
    %v1210 = vpop.xlane.xlu0 %1209
    %v1211 = vmul.f32 %v1207, %v108
    %v1212 = vmul.f32 %v1210, %v108
    %v1213 = vadd.f32 %v1211, 1e-12
    %v1214 = vadd.f32 %v1212, 1e-12
    %v1215 = vrsqrt.pop %v1213
    %v1216 = vmul.f32 %v1215, %v1213
    %v1217 = vmul.f32 %v1216, %v1215
    %v1218 = vmul.f32 0.5, %v1217
    %v1219 = vsub.f32 1.5, %v1218
    %v1220 = vmul.f32 %v1215, %v1219
    %vm1221 = vweird.f32 %v1213
    %vm1222 = vweird.f32 %v1215
    %vm1223 = vmor %vm1221, %vm1222
    %v1224 = vsel %vm1223, %v1215, %v1220
    %v1225 = vrsqrt.pop %v1214
    %v1226 = vmul.f32 %v1225, %v1214
    %v1227 = vmul.f32 %v1226, %v1225
    %v1228 = vmul.f32 0.5, %v1227
    %v1229 = vsub.f32 1.5, %v1228
    %v1230 = vmul.f32 %v1225, %v1229
    %vm1231 = vweird.f32 %v1214
    %vm1232 = vweird.f32 %v1225
    %vm1233 = vmor %vm1231, %vm1232
    %v1234 = vsel %vm1233, %v1225, %v1230
    %v1235 = vmul.f32 %v1201, %v1224
    %v1236 = vmul.f32 %v1202, %v1234
    %v1237 = vperm.slane %v1191, 0
    %v1238 = vmul.f32 %v1235, %v1237
    %v1239 = vmul.f32 %v1236, %v1237
    %v1240 = vperm.slane %v1192, 0
    %v1241 = vadd.f32 %v1238, %v1240
    %v1242 = vadd.f32 %v1239, %v1240
    %v1243 = vld [vmem:[#allocation8] sm:$0xff]
    %v1244 = vld [vmem:[#allocation8 + $0x8] sm:$0xff]
    %v1245 = vld [vmem:[#allocation8 + $0x10] sm:$0xff]
    %v1246 = vld [vmem:[#allocation8 + $0x18] sm:$0xff]
    %v1247 = vld [vmem:[#allocation7 + $0x12] sm:$0x1]
    %v1248 = vperm.slane %v1247, 0
    %v1250 = vsel %vm95, %v1241, 0
    %v1253 = vsel %vm95, %v1242, 0
    %1255 = vmatpush.msra.mxu0 0.0
    %1256 = vmatpush.msra.mxu0 0.0
    %1257 = vmatpush.msra.mxu0 0.0
    %1258 = vmatpush.msra.mxu0 0.0
    %1259 = vmatpush.msra.mxu0 0.0
    %1260 = vmatpush.msra.mxu0 0.0
    %1261 = vmatpush.msra.mxu0 0.0
    %1262 = vmatpush.msra.mxu0 0.0
    %1263 = vmatpush.msra.mxu0 0.0
    %1264 = vmatpush.msra.mxu0 0.0
    %1265 = vmatpush.msra.mxu0 0.0
    %1266 = vmatpush.msra.mxu0 0.0
    %1267 = vmatpush.msra.mxu0 %v1246
    %1268 = vmatpush.msra.mxu0 %v1245
    %1269 = vmatpush.msra.mxu0 %v1244
    %1270 = vmatpush.msra.mxu0 %v1243
    %1271 = vmatmul.f32.gmra.mxu0 %v1250
    %v1272 = vpop.f32.mrf.mxu0
    %v1273 = vadd.f32 %v1248, %v1272
    %1274 = vmatmul.f32.gmra.mxu0 %v1253
    %v1275 = vpop.f32.mrf.mxu0
    %v1276 = vadd.f32 %v1248, %v1275
    %1277 = vdwg.mxu0
    %1278 = vst [vmem:[#allocation10] sm:$0xff] %v1273
    %1279 = vst [vmem:[#allocation10 + $0x8] sm:$0xff] %v1276
    // Predicated region
    $region50: #{tpu_custom_call.1} parent=1 // pred_check
      _
    $region51: #{tpu_custom_call.1} parent=1 // pred_check_branch
      %1281 = sbr.rel (0) target = $region53
    $region52: #{tpu_custom_call.1} parent=1 // pred_region
      %1283 = vsyncadd [#allocation4], 0
      %s1284 = sshll.u32 [#allocation10], 4
      %s1285 = int_to_ptr.vmem [resolvable:$true] %s1284
      %s1286 = sshll.u32 %s8, 4
      %s1287 = int_to_ptr.hbm [resolvable:$true] %s1286
      %1292 = dma.vmem_to_hbm [thread:$0]  %s1285, 256, %s1287, [#allocation4], 128, 128, 8
    $region53: #{tpu_custom_call.1} parent=1 // pred_fallthru
      _
    // Predicated region
    $region54: #{tpu_custom_call.1} parent=1 // pred_check
      _
    $region55: #{tpu_custom_call.1} parent=1 // pred_check_branch
      %1294 = sbr.rel (0) target = $region57
    $region56: #{tpu_custom_call.1} parent=1 // pred_region
      %1296 = dma.done [#allocation4], 256
    $region57: #{tpu_custom_call.1} parent=1 // pred_fallthru
      _
    %1297 = vsyncpa [#allocation3], 1
    %1298 = vsyncpa [#allocation6], 1
    %1299 = vsyncpa [#allocation9], 1
    %1300 = vsyncpa [#allocation4], 1

</llo_original>
